<compile_context>
chip_gen: v7x
topology: tpu7x:2x2x1
jax: 0.10.0
libtpu: 0.0.40
codegen_flags: <defaults>
</compile_context>

<pallas_src>
import jax
import jax.numpy as jnp
from jax.experimental import pallas as pl
from jax.experimental.pallas import tpu as pltpu


# ----------------------------------------------------------------------------
# Fused kernel: attention -> LSTM recurrence -> dense head, one batch tile.
#   a:        (Bt, S, D)    f32
#   a_flat:   (Bt, S*D)     matmul dtype (same data, flattened in the wrapper)
#   wxw:      (D, S*N)      Wx weight tiled S times along lanes (matmul dtype)
#   wxb:      (1, S*N)      f32
#   whk:      (S*D, S*N)    kron(I_S, Wxhat^T)  (matmul dtype)
#   whb:      (1, S*N)      f32
#   attm:     (S*N, S)      kron(I_S, att_w^T)  (f32 — keep logits reduce f32)
#   attb:     (1, 1)        SMEM scalar
#   wih:      (D, 4L)       packed input gate weights, order i,f,g,o (matmul dtype)
#   bg:       (1, 4L)       b_ih + b_hh, packed (f32)
#   whh:      (L, 4L)       packed recurrent weights (f32 — recurrence stays f32)
#   dw:       (L, 2)  db: (1, 2)
#   out:      (Bt, 2)
# ----------------------------------------------------------------------------
def fused_kernel(a_ref, aflat_ref, wxw_ref, wxb_ref, whk_ref, whb_ref,
                 attm_ref, attb_ref, wih_ref, bg_ref, whh_ref, dw_ref, db_ref,
                 out_ref):
    f32 = jnp.float32
    Bt, S, D = a_ref.shape
    SN = wxw_ref.shape[1]           # S * N  (== 128 for the default config)
    G = whh_ref.shape[1]            # 4 * L  (== 128 for the default config)
    L = G // 4
    BS = Bt * S
    mdt = wxw_ref.dtype             # matmul operand dtype (f32 or bf16)

    x = a_ref[...]                                  # (Bt, S, D) f32
    x2 = x.reshape(BS, D).astype(mdt)               # rows (b, t); leading-dim reshape only
    xflat = aflat_ref[...]                          # (Bt, S*D), already matmul dtype

    # ---- attention projections: both lane-dense (S*N output lanes), f32 acc ----
    wx_wide = jnp.dot(x2, wxw_ref[...],
                      preferred_element_type=f32) + wxb_ref[...]        # (BS, S*N)
    wh_wide = jnp.dot(xflat, whk_ref[...],
                      preferred_element_type=f32) + whb_ref[...]        # (Bt, S*N)

    # ---- pairwise tanh: sublane = t, lanes = (s, n) ----
    pair = jnp.tanh(wx_wide.reshape(Bt, S, SN) + wh_wide[:, None, :])   # (Bt, S, S*N)

    # ---- attention weights folded into a single f32 MXU reduce ----
    logits = jnp.dot(pair.reshape(BS, SN), attm_ref[...],
                     preferred_element_type=f32) + attb_ref[0, 0]       # (BS, S)
    score3 = jax.nn.sigmoid(logits).reshape(Bt, S, S)                   # (b, t, s)

    # ---- attention mix: S-step VPU multiply-accumulate on resident vregs ----
    x_att = score3[:, :, 0:1] * x[:, 0:1, :]
    for s in range(1, S):
        x_att = x_att + score3[:, :, s:s + 1] * x[:, s:s + 1, :]        # (Bt, S, D)

    # ---- packed, hoisted input-side LSTM matmul: one (BS,D)@(D,4L), bias folded ----
    gx = jnp.dot(x_att.reshape(BS, D).astype(mdt), wih_ref[...],
                 preferred_element_type=f32) + bg_ref[...]              # (BS, 4L)
    gx3 = gx.reshape(Bt, S, G)

    # ---- fully-unrolled recurrence: ONE packed h@(L,4L) matmul per step (f32) ----
    # TODO(synk): if S grows beyond ~8, switch to lax.fori_loop(..., unroll=k)
    # with gx indexed via pl.ds to bound live ranges.
    whh = whh_ref[...]                                                  # (L, 4L)
    h = jnp.zeros((Bt, L), f32)
    c = jnp.zeros((Bt, L), f32)
    for t in range(S):
        z = gx3[:, t, :] + jnp.dot(h, whh, preferred_element_type=f32)  # (Bt, 4L)
        ig = jax.nn.sigmoid(z[:, 0 * L:1 * L])
        fg = jax.nn.sigmoid(z[:, 1 * L:2 * L])
        gg = jnp.tanh(z[:, 2 * L:3 * L])
        og = jax.nn.sigmoid(z[:, 3 * L:4 * L])
        c = fg * c + ig * gg
        h = og * jnp.tanh(c)

    # ---- dense head on the last hidden state (tiny; lane-sparse store is fine) ----
    out_ref[...] = jnp.dot(h, dw_ref[...],
                           preferred_element_type=f32) + db_ref[...]


# ----------------------------------------------------------------------------
# Wrapper: weight re-layout (tile / kron / per-gate packing) + pallas_call.
# ----------------------------------------------------------------------------
def lstm_att_classifier_forward(A, p, *, block_b=None, use_bf16_matmul=False):
    B, S, D = A.shape
    N = p["wx_w"].shape[0]
    L = p["w_hh"].shape[1]
    SN = S * N
    G = 4 * L
    f32 = jnp.float32
    mdt = jnp.bfloat16 if use_bf16_matmul else f32

    # Tile sizing: BS = block_b*S sublane rows per matmul — bigger amortizes the
    # ~0.35us grid-step overhead and the fixed-cost serial recurrence.
    #   v7x : cap ~256-512 (64 MiB VMEM) and keep >=2 grid tiles for both TCs.
    #   v5e/v6e : can push to ~1024 (128 MiB VMEM); single TC, win is fewer steps.
    if block_b is None:
        block_b = min(B, 256)
    n_btiles = pl.cdiv(B, block_b)
    B_pad = n_btiles * block_b

    A = A.astype(f32)
    if B_pad != B:
        # Zero-pad the batch so no grid step reads a partial block; padded rows
        # produce finite garbage that is sliced off below.
        A_p = jnp.zeros((B_pad, S, D), f32).at[:B].set(A)
    else:
        A_p = A
    # Pre-flattened view for the kron projection (avoids in-kernel sublane->lane
    # reshape); pre-cast to the matmul dtype once here.
    A_flat = A_p.reshape(B_pad, S * D).astype(mdt)

    # Attention weights, laid out so every matmul output is lane-dense.
    wxw_t = jnp.tile(p["wx_w"].T.astype(f32), (1, S)).astype(mdt)              # (D, S*N)
    wxb_t = jnp.tile(p["wx_b"].reshape(1, N).astype(f32), (1, S))              # (1, S*N)
    whk = jnp.kron(jnp.eye(S, dtype=f32),
                   p["wxhat_w"].T.astype(f32)).astype(mdt)                     # (S*D, S*N)
    whb_t = jnp.tile(p["wxhat_b"].reshape(1, N).astype(f32), (1, S))           # (1, S*N)
    att_mat = jnp.kron(jnp.eye(S, dtype=f32),
                       p["att_w"].reshape(N, 1).astype(f32))                   # (S*N, S), f32
    att_b = p["att_b"].reshape(1, 1).astype(f32)

    # LSTM weights packed per 4L=128 lanes; PyTorch gate order i, f, g, o.
    wih_packed = p["w_ih"].T.astype(mdt)                                       # (D, 4L)
    bg = (p["b_ih"] + p["b_hh"]).reshape(1, G).astype(f32)                     # (1, 4L)
    whh_packed = p["w_hh"].T.astype(f32)                                       # (L, 4L), f32
    dw = p["dense_w"].T.astype(f32)                                            # (L, 2)
    db = p["dense_b"].reshape(1, 2).astype(f32)

    def rep(shape):
        nd = len(shape)
        return pl.BlockSpec(shape, lambda i, nd=nd: (0,) * nd)

    out = pl.pallas_call(
        fused_kernel,
        out_shape=jax.ShapeDtypeStruct((B_pad, 2), f32),
        grid=(n_btiles,),
        in_specs=[
            pl.BlockSpec((block_b, S, D), lambda i: (i, 0, 0)),    # A batch tile
            pl.BlockSpec((block_b, S * D), lambda i: (i, 0)),      # A flattened tile
            rep((D, SN)), rep((1, SN)),                            # Wx (tiled)
            rep((S * D, SN)), rep((1, SN)),                        # Wxhat (kron)
            rep((SN, S)),                                          # att reduce matrix
            pl.BlockSpec((1, 1), lambda i: (0, 0),
                         memory_space=pltpu.MemorySpace.SMEM),     # att bias scalar
            rep((D, G)), rep((1, G)),                              # packed W_ih, biases
            rep((L, G)),                                           # packed W_hh
            rep((L, 2)), rep((1, 2)),                              # dense head
        ],
        out_specs=pl.BlockSpec((block_b, 2), lambda i: (i, 0)),
        compiler_params=pltpu.CompilerParams(
            dimension_semantics=("parallel",),     # batch tiles -> megacore on v7x
            vmem_limit_bytes=48 * 1024 * 1024),    # <= ~48 MiB keeps v7x (64 MiB) safe
    )(A_p, A_flat, wxw_t, wxb_t, whk, whb_t, att_mat, att_b,
      wih_packed, bg, whh_packed, dw, db)
    return out[:B]


# ----------------------------------------------------------------------------
# Pure-JAX reference (mirrors the PyTorch forward exactly) for validation.
# ----------------------------------------------------------------------------
def reference_forward(A, p):
    B, S, D = A.shape
    wx = A @ p["wx_w"].T + p["wx_b"]                                  # (B,S,N)
    wthat = jnp.broadcast_to(A[:, None, :, :], (B, S, S, D))
    wxhat = wthat @ p["wxhat_w"].T + p["wxhat_b"]                     # (B,S,S,N)
    att = jax.nn.sigmoid(jnp.tanh(wxhat + wx[:, :, None, :]) @ p["att_w"].T
                         + p["att_b"])                                # (B,S,S,1)
    X = jnp.sum(wthat * att, axis=-2)                                 # (B,S,D)

    L = p["w_hh"].shape[1]
    h = jnp.zeros((B, L), jnp.float32)
    c = jnp.zeros((B, L), jnp.float32)
    for t in range(S):
        xt = X[:, t, :]
        g = xt @ p["w_ih"].T + h @ p["w_hh"].T + p["b_ih"] + p["b_hh"]
        i = jax.nn.sigmoid(g[:, :L])
        f = jax.nn.sigmoid(g[:, L:2 * L])
        gg = jnp.tanh(g[:, 2 * L:3 * L])
        o = jax.nn.sigmoid(g[:, 3 * L:])
        c = f * c + i * gg
        h = o * jnp.tanh(c)
    return h @ p["dense_w"].T + p["dense_b"]


def _uniform(key, shape, fan_in):
    bound = float(fan_in) ** -0.5
    return jax.random.uniform(key, shape, jnp.float32, -bound, bound)


def init_params(key, hidden_size, attention_neurons, lstm_size):
    D, N, L = hidden_size, attention_neurons, lstm_size
    ks = jax.random.split(key, 12)
    return {
        # AttentionLSTM
        "wx_w": _uniform(ks[0], (N, D), D), "wx_b": _uniform(ks[1], (N,), D),
        "wxhat_w": _uniform(ks[2], (N, D), D), "wxhat_b": _uniform(ks[3], (N,), D),
        "att_w": _uniform(ks[4], (1, N), N), "att_b": _uniform(ks[5], (1,), N),
        # LSTM (single layer, unidirectional; gate order i,f,g,o)
        "w_ih": _uniform(ks[6], (4 * L, D), L), "w_hh": _uniform(ks[7], (4 * L, L), L),
        "b_ih": _uniform(ks[8], (4 * L,), L), "b_hh": _uniform(ks[9], (4 * L,), L),
        # Dense head -> 2 classes
        "dense_w": _uniform(ks[10], (2, L), L), "dense_b": _uniform(ks[11], (2,), L),
    }
    # TODO(synk): self.bilstm and self.loss_criterion are unused in forward() and
    # are intentionally not implemented.


if __name__ == "__main__":
    # hidden_size=32, attention_neurons=16, lstm_size=32; batch=2, seq=8
    B, S, D, N, L = 2, 8, 32, 16, 32
    key = jax.random.PRNGKey(0)
    k_params, k_input = jax.random.split(key)
    params = init_params(k_params, hidden_size=D, attention_neurons=N,
                         lstm_size=L)
    A = jax.random.normal(k_input, (B, S, D), jnp.float32)
    ref = reference_forward(A, params)

    # f32 path: strict parity with the reference.
    out = jax.block_until_ready(lstm_att_classifier_forward(A, params))
    assert out.shape == (B, 2)
    assert jnp.allclose(out, ref, atol=1e-4, rtol=1e-4), (out, ref)

    # Multi-tile + batch-padding path (grid > 1, B not a multiple of block_b).
    B2 = 40
    A2 = jax.random.normal(jax.random.PRNGKey(1), (B2, S, D), jnp.float32)
    out2 = jax.block_until_ready(
        lstm_att_classifier_forward(A2, params, block_b=16))
    ref2 = reference_forward(A2, params)
    assert out2.shape == (B2, 2)
    assert jnp.allclose(out2, ref2, atol=1e-4, rtol=1e-4)

    # bf16-MXU path (v5e oriented): bf16 operands only on the projection / gx
    # matmuls, f32 accumulation; logits reduce, attention mix and recurrence f32.
    out_bf16 = jax.block_until_ready(
        lstm_att_classifier_forward(A, params, use_bf16_matmul=True))
    assert out_bf16.shape == (B, 2)
    assert bool(jnp.all(jnp.isfinite(out_bf16)))
    assert jnp.allclose(out_bf16, ref, atol=1e-1, rtol=1e-1)

    print("KERNEL_OK")
</pallas_src>

<mosaic_0001>
module attributes {stable_mosaic.version = 11 : i64} {
  func.func @fused_kernel(%arg0: i32, %arg1: memref<2x8x32xf32, #tpu.memory_space<vmem>>, %arg2: memref<2x256xf32, #tpu.memory_space<vmem>>, %arg3: memref<32x128xf32, #tpu.memory_space<vmem>>, %arg4: memref<1x128xf32, #tpu.memory_space<vmem>>, %arg5: memref<256x128xf32, #tpu.memory_space<vmem>>, %arg6: memref<1x128xf32, #tpu.memory_space<vmem>>, %arg7: memref<128x8xf32, #tpu.memory_space<vmem>>, %arg8: memref<1x1xf32, #tpu.memory_space<smem>>, %arg9: memref<32x128xf32, #tpu.memory_space<vmem>>, %arg10: memref<1x128xf32, #tpu.memory_space<vmem>>, %arg11: memref<32x128xf32, #tpu.memory_space<vmem>>, %arg12: memref<32x2xf32, #tpu.memory_space<vmem>>, %arg13: memref<1x2xf32, #tpu.memory_space<vmem>>, %arg14: memref<2x2xf32, #tpu.memory_space<vmem>>) attributes {dimension_semantics = [#tpu.dimension_semantics<parallel>], iteration_bounds = array<i64: 1>, scalar_prefetch = 0 : i64, scratch_operands = 0 : i64, tpu.core_type = #tpu.core_type<tc>, window_params = [{transform_indices = @transform_0, window_bounds = array<i64: 2, 8, 32>}, {transform_indices = @transform_1, window_bounds = array<i64: 2, 256>}, {pipeline_mode = #tpu.pipeline_mode<synchronous>, transform_indices = @transform_2, window_bounds = array<i64: 32, 128>}, {pipeline_mode = #tpu.pipeline_mode<synchronous>, transform_indices = @transform_3, window_bounds = array<i64: 1, 128>}, {pipeline_mode = #tpu.pipeline_mode<synchronous>, transform_indices = @transform_4, window_bounds = array<i64: 256, 128>}, {pipeline_mode = #tpu.pipeline_mode<synchronous>, transform_indices = @transform_5, window_bounds = array<i64: 1, 128>}, {pipeline_mode = #tpu.pipeline_mode<synchronous>, transform_indices = @transform_6, window_bounds = array<i64: 128, 8>}, {transform_indices = @transform_7, window_bounds = array<i64: 1, 1>}, {pipeline_mode = #tpu.pipeline_mode<synchronous>, transform_indices = @transform_8, window_bounds = array<i64: 32, 128>}, {pipeline_mode = #tpu.pipeline_mode<synchronous>, transform_indices = @transform_9, window_bounds = array<i64: 1, 128>}, {pipeline_mode = #tpu.pipeline_mode<synchronous>, transform_indices = @transform_10, window_bounds = array<i64: 32, 128>}, {pipeline_mode = #tpu.pipeline_mode<synchronous>, transform_indices = @transform_11, window_bounds = array<i64: 32, 2>}, {pipeline_mode = #tpu.pipeline_mode<synchronous>, transform_indices = @transform_12, window_bounds = array<i64: 1, 2>}, {transform_indices = @transform_13, window_bounds = array<i64: 2, 2>}]} {
    %c0 = arith.constant 0 : index
    %c0_0 = arith.constant 0 : index
    %c0_1 = arith.constant 0 : index
    %0 = vector.load %arg1[%c0, %c0_0, %c0_1] : memref<2x8x32xf32, #tpu.memory_space<vmem>>, vector<2x8x32xf32>
    %1 = vector.shape_cast %0 : vector<2x8x32xf32> to vector<16x32xf32>
    %c0_2 = arith.constant 0 : index
    %c0_3 = arith.constant 0 : index
    %2 = vector.load %arg2[%c0_2, %c0_3] : memref<2x256xf32, #tpu.memory_space<vmem>>, vector<2x256xf32>
    %c0_4 = arith.constant 0 : index
    %c0_5 = arith.constant 0 : index
    %3 = vector.load %arg3[%c0_4, %c0_5] : memref<32x128xf32, #tpu.memory_space<vmem>>, vector<32x128xf32>
    %cst = arith.constant dense<0.000000e+00> : vector<16x128xf32>
    %4 = tpu.matmul %1, %3, %cst {dimension_numbers = #tpu.dot_dimension_numbers<[1], [0], [0], [1], [0, 0, 1, 1], [], []>} : vector<16x32xf32>, vector<32x128xf32>, vector<16x128xf32> -> vector<16x128xf32>
    %c0_6 = arith.constant 0 : index
    %c0_7 = arith.constant 0 : index
    %5 = vector.load %arg4[%c0_6, %c0_7] : memref<1x128xf32, #tpu.memory_space<vmem>>, vector<1x128xf32>
    %6 = vector.broadcast %5 : vector<1x128xf32> to vector<16x128xf32>
    %7 = arith.addf %4, %6 : vector<16x128xf32>
    %c0_8 = arith.constant 0 : index
    %c0_9 = arith.constant 0 : index
    %8 = vector.load %arg5[%c0_8, %c0_9] : memref<256x128xf32, #tpu.memory_space<vmem>>, vector<256x128xf32>
    %cst_10 = arith.constant dense<0.000000e+00> : vector<2x128xf32>
    %9 = tpu.matmul %2, %8, %cst_10 {dimension_numbers = #tpu.dot_dimension_numbers<[1], [0], [0], [1], [0, 0, 1, 1], [], []>} : vector<2x256xf32>, vector<256x128xf32>, vector<2x128xf32> -> vector<2x128xf32>
    %c0_11 = arith.constant 0 : index
    %c0_12 = arith.constant 0 : index
    %10 = vector.load %arg6[%c0_11, %c0_12] : memref<1x128xf32, #tpu.memory_space<vmem>>, vector<1x128xf32>
    %11 = vector.broadcast %10 : vector<1x128xf32> to vector<2x128xf32>
    %12 = arith.addf %9, %11 : vector<2x128xf32>
    %13 = vector.shape_cast %7 : vector<16x128xf32> to vector<2x8x128xf32>
    %14 = vector.shape_cast %12 : vector<2x128xf32> to vector<2x1x128xf32>
    %15 = vector.broadcast %14 : vector<2x1x128xf32> to vector<2x8x128xf32>
    %16 = arith.addf %13, %15 : vector<2x8x128xf32>
    %17 = math.tanh %16 : vector<2x8x128xf32>
    %18 = vector.shape_cast %17 : vector<2x8x128xf32> to vector<16x128xf32>
    %c0_13 = arith.constant 0 : index
    %c0_14 = arith.constant 0 : index
    %19 = vector.load %arg7[%c0_13, %c0_14] : memref<128x8xf32, #tpu.memory_space<vmem>>, vector<128x8xf32>
    %cst_15 = arith.constant dense<0.000000e+00> : vector<16x8xf32>
    %20 = tpu.matmul %18, %19, %cst_15 {dimension_numbers = #tpu.dot_dimension_numbers<[1], [0], [0], [1], [0, 0, 1, 1], [], []>} : vector<16x128xf32>, vector<128x8xf32>, vector<16x8xf32> -> vector<16x8xf32>
    %c0_16 = arith.constant 0 : index
    %c0_17 = arith.constant 0 : index
    %21 = memref.load %arg8[%c0_16, %c0_17] : memref<1x1xf32, #tpu.memory_space<smem>>
    %22 = vector.broadcast %21 : f32 to vector<16x8xf32>
    %23 = arith.addf %20, %22 : vector<16x8xf32>
    %24 = arith.negf %23 : vector<16x8xf32>
    %25 = math.exp %24 : vector<16x8xf32>
    %cst_18 = arith.constant 1.000000e+00 : f32
    %26 = vector.broadcast %cst_18 : f32 to vector<16x8xf32>
    %27 = arith.addf %26, %25 : vector<16x8xf32>
    %28 = arith.divf %26, %27 : vector<16x8xf32>
    %29 = vector.shape_cast %28 : vector<16x8xf32> to vector<2x8x8xf32>
    %30 = vector.extract_strided_slice %29 {offsets = [0, 0, 0], sizes = [2, 8, 1], strides = [1, 1, 1]} : vector<2x8x8xf32> to vector<2x8x1xf32>
    %31 = vector.extract_strided_slice %0 {offsets = [0, 0, 0], sizes = [2, 1, 32], strides = [1, 1, 1]} : vector<2x8x32xf32> to vector<2x1x32xf32>
    %32 = vector.broadcast %30 : vector<2x8x1xf32> to vector<2x8x32xf32>
    %33 = vector.broadcast %31 : vector<2x1x32xf32> to vector<2x8x32xf32>
    %34 = arith.mulf %32, %33 : vector<2x8x32xf32>
    %35 = vector.extract_strided_slice %29 {offsets = [0, 0, 1], sizes = [2, 8, 1], strides = [1, 1, 1]} : vector<2x8x8xf32> to vector<2x8x1xf32>
    %36 = vector.extract_strided_slice %0 {offsets = [0, 1, 0], sizes = [2, 1, 32], strides = [1, 1, 1]} : vector<2x8x32xf32> to vector<2x1x32xf32>
    %37 = vector.broadcast %35 : vector<2x8x1xf32> to vector<2x8x32xf32>
    %38 = vector.broadcast %36 : vector<2x1x32xf32> to vector<2x8x32xf32>
    %39 = arith.mulf %37, %38 : vector<2x8x32xf32>
    %40 = arith.addf %34, %39 : vector<2x8x32xf32>
    %41 = vector.extract_strided_slice %29 {offsets = [0, 0, 2], sizes = [2, 8, 1], strides = [1, 1, 1]} : vector<2x8x8xf32> to vector<2x8x1xf32>
    %42 = vector.extract_strided_slice %0 {offsets = [0, 2, 0], sizes = [2, 1, 32], strides = [1, 1, 1]} : vector<2x8x32xf32> to vector<2x1x32xf32>
    %43 = vector.broadcast %41 : vector<2x8x1xf32> to vector<2x8x32xf32>
    %44 = vector.broadcast %42 : vector<2x1x32xf32> to vector<2x8x32xf32>
    %45 = arith.mulf %43, %44 : vector<2x8x32xf32>
    %46 = arith.addf %40, %45 : vector<2x8x32xf32>
    %47 = vector.extract_strided_slice %29 {offsets = [0, 0, 3], sizes = [2, 8, 1], strides = [1, 1, 1]} : vector<2x8x8xf32> to vector<2x8x1xf32>
    %48 = vector.extract_strided_slice %0 {offsets = [0, 3, 0], sizes = [2, 1, 32], strides = [1, 1, 1]} : vector<2x8x32xf32> to vector<2x1x32xf32>
    %49 = vector.broadcast %47 : vector<2x8x1xf32> to vector<2x8x32xf32>
    %50 = vector.broadcast %48 : vector<2x1x32xf32> to vector<2x8x32xf32>
    %51 = arith.mulf %49, %50 : vector<2x8x32xf32>
    %52 = arith.addf %46, %51 : vector<2x8x32xf32>
    %53 = vector.extract_strided_slice %29 {offsets = [0, 0, 4], sizes = [2, 8, 1], strides = [1, 1, 1]} : vector<2x8x8xf32> to vector<2x8x1xf32>
    %54 = vector.extract_strided_slice %0 {offsets = [0, 4, 0], sizes = [2, 1, 32], strides = [1, 1, 1]} : vector<2x8x32xf32> to vector<2x1x32xf32>
    %55 = vector.broadcast %53 : vector<2x8x1xf32> to vector<2x8x32xf32>
    %56 = vector.broadcast %54 : vector<2x1x32xf32> to vector<2x8x32xf32>
    %57 = arith.mulf %55, %56 : vector<2x8x32xf32>
    %58 = arith.addf %52, %57 : vector<2x8x32xf32>
    %59 = vector.extract_strided_slice %29 {offsets = [0, 0, 5], sizes = [2, 8, 1], strides = [1, 1, 1]} : vector<2x8x8xf32> to vector<2x8x1xf32>
    %60 = vector.extract_strided_slice %0 {offsets = [0, 5, 0], sizes = [2, 1, 32], strides = [1, 1, 1]} : vector<2x8x32xf32> to vector<2x1x32xf32>
    %61 = vector.broadcast %59 : vector<2x8x1xf32> to vector<2x8x32xf32>
    %62 = vector.broadcast %60 : vector<2x1x32xf32> to vector<2x8x32xf32>
    %63 = arith.mulf %61, %62 : vector<2x8x32xf32>
    %64 = arith.addf %58, %63 : vector<2x8x32xf32>
    %65 = vector.extract_strided_slice %29 {offsets = [0, 0, 6], sizes = [2, 8, 1], strides = [1, 1, 1]} : vector<2x8x8xf32> to vector<2x8x1xf32>
    %66 = vector.extract_strided_slice %0 {offsets = [0, 6, 0], sizes = [2, 1, 32], strides = [1, 1, 1]} : vector<2x8x32xf32> to vector<2x1x32xf32>
    %67 = vector.broadcast %65 : vector<2x8x1xf32> to vector<2x8x32xf32>
    %68 = vector.broadcast %66 : vector<2x1x32xf32> to vector<2x8x32xf32>
    %69 = arith.mulf %67, %68 : vector<2x8x32xf32>
    %70 = arith.addf %64, %69 : vector<2x8x32xf32>
    %71 = vector.extract_strided_slice %29 {offsets = [0, 0, 7], sizes = [2, 8, 1], strides = [1, 1, 1]} : vector<2x8x8xf32> to vector<2x8x1xf32>
    %72 = vector.extract_strided_slice %0 {offsets = [0, 7, 0], sizes = [2, 1, 32], strides = [1, 1, 1]} : vector<2x8x32xf32> to vector<2x1x32xf32>
    %73 = vector.broadcast %71 : vector<2x8x1xf32> to vector<2x8x32xf32>
    %74 = vector.broadcast %72 : vector<2x1x32xf32> to vector<2x8x32xf32>
    %75 = arith.mulf %73, %74 : vector<2x8x32xf32>
    %76 = arith.addf %70, %75 : vector<2x8x32xf32>
    %77 = vector.shape_cast %76 : vector<2x8x32xf32> to vector<16x32xf32>
    %c0_19 = arith.constant 0 : index
    %c0_20 = arith.constant 0 : index
    %78 = vector.load %arg9[%c0_19, %c0_20] : memref<32x128xf32, #tpu.memory_space<vmem>>, vector<32x128xf32>
    %cst_21 = arith.constant dense<0.000000e+00> : vector<16x128xf32>
    %79 = tpu.matmul %77, %78, %cst_21 {dimension_numbers = #tpu.dot_dimension_numbers<[1], [0], [0], [1], [0, 0, 1, 1], [], []>} : vector<16x32xf32>, vector<32x128xf32>, vector<16x128xf32> -> vector<16x128xf32>
    %c0_22 = arith.constant 0 : index
    %c0_23 = arith.constant 0 : index
    %80 = vector.load %arg10[%c0_22, %c0_23] : memref<1x128xf32, #tpu.memory_space<vmem>>, vector<1x128xf32>
    %81 = vector.broadcast %80 : vector<1x128xf32> to vector<16x128xf32>
    %82 = arith.addf %79, %81 : vector<16x128xf32>
    %83 = vector.shape_cast %82 : vector<16x128xf32> to vector<2x8x128xf32>
    %c0_24 = arith.constant 0 : index
    %c0_25 = arith.constant 0 : index
    %84 = vector.load %arg11[%c0_24, %c0_25] : memref<32x128xf32, #tpu.memory_space<vmem>>, vector<32x128xf32>
    %cst_26 = arith.constant 0.000000e+00 : f32
    %85 = vector.broadcast %cst_26 : f32 to vector<2x32xf32>
    %cst_27 = arith.constant 0.000000e+00 : f32
    %86 = vector.broadcast %cst_27 : f32 to vector<2x32xf32>
    %87 = vector.extract_strided_slice %83 {offsets = [0, 0, 0], sizes = [2, 1, 128], strides = [1, 1, 1]} : vector<2x8x128xf32> to vector<2x1x128xf32>
    %88 = vector.shape_cast %87 : vector<2x1x128xf32> to vector<2x128xf32>
    %cst_28 = arith.constant dense<0.000000e+00> : vector<2x128xf32>
    %89 = tpu.matmul %85, %84, %cst_28 {dimension_numbers = #tpu.dot_dimension_numbers<[1], [0], [0], [1], [0, 0, 1, 1], [], []>} : vector<2x32xf32>, vector<32x128xf32>, vector<2x128xf32> -> vector<2x128xf32>
    %90 = arith.addf %88, %89 : vector<2x128xf32>
    %91 = vector.extract_strided_slice %90 {offsets = [0, 0], sizes = [2, 32], strides = [1, 1]} : vector<2x128xf32> to vector<2x32xf32>
    %92 = arith.negf %91 : vector<2x32xf32>
    %93 = math.exp %92 : vector<2x32xf32>
    %cst_29 = arith.constant 1.000000e+00 : f32
    %94 = vector.broadcast %cst_29 : f32 to vector<2x32xf32>
    %95 = arith.addf %94, %93 : vector<2x32xf32>
    %96 = arith.divf %94, %95 : vector<2x32xf32>
    %97 = vector.extract_strided_slice %90 {offsets = [0, 32], sizes = [2, 32], strides = [1, 1]} : vector<2x128xf32> to vector<2x32xf32>
    %98 = arith.negf %97 : vector<2x32xf32>
    %99 = math.exp %98 : vector<2x32xf32>
    %cst_30 = arith.constant 1.000000e+00 : f32
    %100 = vector.broadcast %cst_30 : f32 to vector<2x32xf32>
    %101 = arith.addf %100, %99 : vector<2x32xf32>
    %102 = arith.divf %100, %101 : vector<2x32xf32>
    %103 = vector.extract_strided_slice %90 {offsets = [0, 64], sizes = [2, 32], strides = [1, 1]} : vector<2x128xf32> to vector<2x32xf32>
    %104 = math.tanh %103 : vector<2x32xf32>
    %105 = vector.extract_strided_slice %90 {offsets = [0, 96], sizes = [2, 32], strides = [1, 1]} : vector<2x128xf32> to vector<2x32xf32>
    %106 = arith.negf %105 : vector<2x32xf32>
    %107 = math.exp %106 : vector<2x32xf32>
    %cst_31 = arith.constant 1.000000e+00 : f32
    %108 = vector.broadcast %cst_31 : f32 to vector<2x32xf32>
    %109 = arith.addf %108, %107 : vector<2x32xf32>
    %110 = arith.divf %108, %109 : vector<2x32xf32>
    %111 = arith.mulf %102, %86 : vector<2x32xf32>
    %112 = arith.mulf %96, %104 : vector<2x32xf32>
    %113 = arith.addf %111, %112 : vector<2x32xf32>
    %114 = math.tanh %113 : vector<2x32xf32>
    %115 = arith.mulf %110, %114 : vector<2x32xf32>
    %116 = vector.extract_strided_slice %83 {offsets = [0, 1, 0], sizes = [2, 1, 128], strides = [1, 1, 1]} : vector<2x8x128xf32> to vector<2x1x128xf32>
    %117 = vector.shape_cast %116 : vector<2x1x128xf32> to vector<2x128xf32>
    %cst_32 = arith.constant dense<0.000000e+00> : vector<2x128xf32>
    %118 = tpu.matmul %115, %84, %cst_32 {dimension_numbers = #tpu.dot_dimension_numbers<[1], [0], [0], [1], [0, 0, 1, 1], [], []>} : vector<2x32xf32>, vector<32x128xf32>, vector<2x128xf32> -> vector<2x128xf32>
    %119 = arith.addf %117, %118 : vector<2x128xf32>
    %120 = vector.extract_strided_slice %119 {offsets = [0, 0], sizes = [2, 32], strides = [1, 1]} : vector<2x128xf32> to vector<2x32xf32>
    %121 = arith.negf %120 : vector<2x32xf32>
    %122 = math.exp %121 : vector<2x32xf32>
    %cst_33 = arith.constant 1.000000e+00 : f32
    %123 = vector.broadcast %cst_33 : f32 to vector<2x32xf32>
    %124 = arith.addf %123, %122 : vector<2x32xf32>
    %125 = arith.divf %123, %124 : vector<2x32xf32>
    %126 = vector.extract_strided_slice %119 {offsets = [0, 32], sizes = [2, 32], strides = [1, 1]} : vector<2x128xf32> to vector<2x32xf32>
    %127 = arith.negf %126 : vector<2x32xf32>
    %128 = math.exp %127 : vector<2x32xf32>
    %cst_34 = arith.constant 1.000000e+00 : f32
    %129 = vector.broadcast %cst_34 : f32 to vector<2x32xf32>
    %130 = arith.addf %129, %128 : vector<2x32xf32>
    %131 = arith.divf %129, %130 : vector<2x32xf32>
    %132 = vector.extract_strided_slice %119 {offsets = [0, 64], sizes = [2, 32], strides = [1, 1]} : vector<2x128xf32> to vector<2x32xf32>
    %133 = math.tanh %132 : vector<2x32xf32>
    %134 = vector.extract_strided_slice %119 {offsets = [0, 96], sizes = [2, 32], strides = [1, 1]} : vector<2x128xf32> to vector<2x32xf32>
    %135 = arith.negf %134 : vector<2x32xf32>
    %136 = math.exp %135 : vector<2x32xf32>
    %cst_35 = arith.constant 1.000000e+00 : f32
    %137 = vector.broadcast %cst_35 : f32 to vector<2x32xf32>
    %138 = arith.addf %137, %136 : vector<2x32xf32>
    %139 = arith.divf %137, %138 : vector<2x32xf32>
    %140 = arith.mulf %131, %113 : vector<2x32xf32>
    %141 = arith.mulf %125, %133 : vector<2x32xf32>
    %142 = arith.addf %140, %141 : vector<2x32xf32>
    %143 = math.tanh %142 : vector<2x32xf32>
    %144 = arith.mulf %139, %143 : vector<2x32xf32>
    %145 = vector.extract_strided_slice %83 {offsets = [0, 2, 0], sizes = [2, 1, 128], strides = [1, 1, 1]} : vector<2x8x128xf32> to vector<2x1x128xf32>
    %146 = vector.shape_cast %145 : vector<2x1x128xf32> to vector<2x128xf32>
    %cst_36 = arith.constant dense<0.000000e+00> : vector<2x128xf32>
    %147 = tpu.matmul %144, %84, %cst_36 {dimension_numbers = #tpu.dot_dimension_numbers<[1], [0], [0], [1], [0, 0, 1, 1], [], []>} : vector<2x32xf32>, vector<32x128xf32>, vector<2x128xf32> -> vector<2x128xf32>
    %148 = arith.addf %146, %147 : vector<2x128xf32>
    %149 = vector.extract_strided_slice %148 {offsets = [0, 0], sizes = [2, 32], strides = [1, 1]} : vector<2x128xf32> to vector<2x32xf32>
    %150 = arith.negf %149 : vector<2x32xf32>
    %151 = math.exp %150 : vector<2x32xf32>
    %cst_37 = arith.constant 1.000000e+00 : f32
    %152 = vector.broadcast %cst_37 : f32 to vector<2x32xf32>
    %153 = arith.addf %152, %151 : vector<2x32xf32>
    %154 = arith.divf %152, %153 : vector<2x32xf32>
    %155 = vector.extract_strided_slice %148 {offsets = [0, 32], sizes = [2, 32], strides = [1, 1]} : vector<2x128xf32> to vector<2x32xf32>
    %156 = arith.negf %155 : vector<2x32xf32>
    %157 = math.exp %156 : vector<2x32xf32>
    %cst_38 = arith.constant 1.000000e+00 : f32
    %158 = vector.broadcast %cst_38 : f32 to vector<2x32xf32>
    %159 = arith.addf %158, %157 : vector<2x32xf32>
    %160 = arith.divf %158, %159 : vector<2x32xf32>
    %161 = vector.extract_strided_slice %148 {offsets = [0, 64], sizes = [2, 32], strides = [1, 1]} : vector<2x128xf32> to vector<2x32xf32>
    %162 = math.tanh %161 : vector<2x32xf32>
    %163 = vector.extract_strided_slice %148 {offsets = [0, 96], sizes = [2, 32], strides = [1, 1]} : vector<2x128xf32> to vector<2x32xf32>
    %164 = arith.negf %163 : vector<2x32xf32>
    %165 = math.exp %164 : vector<2x32xf32>
    %cst_39 = arith.constant 1.000000e+00 : f32
    %166 = vector.broadcast %cst_39 : f32 to vector<2x32xf32>
    %167 = arith.addf %166, %165 : vector<2x32xf32>
    %168 = arith.divf %166, %167 : vector<2x32xf32>
    %169 = arith.mulf %160, %142 : vector<2x32xf32>
    %170 = arith.mulf %154, %162 : vector<2x32xf32>
    %171 = arith.addf %169, %170 : vector<2x32xf32>
    %172 = math.tanh %171 : vector<2x32xf32>
    %173 = arith.mulf %168, %172 : vector<2x32xf32>
    %174 = vector.extract_strided_slice %83 {offsets = [0, 3, 0], sizes = [2, 1, 128], strides = [1, 1, 1]} : vector<2x8x128xf32> to vector<2x1x128xf32>
    %175 = vector.shape_cast %174 : vector<2x1x128xf32> to vector<2x128xf32>
    %cst_40 = arith.constant dense<0.000000e+00> : vector<2x128xf32>
    %176 = tpu.matmul %173, %84, %cst_40 {dimension_numbers = #tpu.dot_dimension_numbers<[1], [0], [0], [1], [0, 0, 1, 1], [], []>} : vector<2x32xf32>, vector<32x128xf32>, vector<2x128xf32> -> vector<2x128xf32>
    %177 = arith.addf %175, %176 : vector<2x128xf32>
    %178 = vector.extract_strided_slice %177 {offsets = [0, 0], sizes = [2, 32], strides = [1, 1]} : vector<2x128xf32> to vector<2x32xf32>
    %179 = arith.negf %178 : vector<2x32xf32>
    %180 = math.exp %179 : vector<2x32xf32>
    %cst_41 = arith.constant 1.000000e+00 : f32
    %181 = vector.broadcast %cst_41 : f32 to vector<2x32xf32>
    %182 = arith.addf %181, %180 : vector<2x32xf32>
    %183 = arith.divf %181, %182 : vector<2x32xf32>
    %184 = vector.extract_strided_slice %177 {offsets = [0, 32], sizes = [2, 32], strides = [1, 1]} : vector<2x128xf32> to vector<2x32xf32>
    %185 = arith.negf %184 : vector<2x32xf32>
    %186 = math.exp %185 : vector<2x32xf32>
    %cst_42 = arith.constant 1.000000e+00 : f32
    %187 = vector.broadcast %cst_42 : f32 to vector<2x32xf32>
    %188 = arith.addf %187, %186 : vector<2x32xf32>
    %189 = arith.divf %187, %188 : vector<2x32xf32>
    %190 = vector.extract_strided_slice %177 {offsets = [0, 64], sizes = [2, 32], strides = [1, 1]} : vector<2x128xf32> to vector<2x32xf32>
    %191 = math.tanh %190 : vector<2x32xf32>
    %192 = vector.extract_strided_slice %177 {offsets = [0, 96], sizes = [2, 32], strides = [1, 1]} : vector<2x128xf32> to vector<2x32xf32>
    %193 = arith.negf %192 : vector<2x32xf32>
    %194 = math.exp %193 : vector<2x32xf32>
    %cst_43 = arith.constant 1.000000e+00 : f32
    %195 = vector.broadcast %cst_43 : f32 to vector<2x32xf32>
    %196 = arith.addf %195, %194 : vector<2x32xf32>
    %197 = arith.divf %195, %196 : vector<2x32xf32>
    %198 = arith.mulf %189, %171 : vector<2x32xf32>
    %199 = arith.mulf %183, %191 : vector<2x32xf32>
    %200 = arith.addf %198, %199 : vector<2x32xf32>
    %201 = math.tanh %200 : vector<2x32xf32>
    %202 = arith.mulf %197, %201 : vector<2x32xf32>
    %203 = vector.extract_strided_slice %83 {offsets = [0, 4, 0], sizes = [2, 1, 128], strides = [1, 1, 1]} : vector<2x8x128xf32> to vector<2x1x128xf32>
    %204 = vector.shape_cast %203 : vector<2x1x128xf32> to vector<2x128xf32>
    %cst_44 = arith.constant dense<0.000000e+00> : vector<2x128xf32>
    %205 = tpu.matmul %202, %84, %cst_44 {dimension_numbers = #tpu.dot_dimension_numbers<[1], [0], [0], [1], [0, 0, 1, 1], [], []>} : vector<2x32xf32>, vector<32x128xf32>, vector<2x128xf32> -> vector<2x128xf32>
    %206 = arith.addf %204, %205 : vector<2x128xf32>
    %207 = vector.extract_strided_slice %206 {offsets = [0, 0], sizes = [2, 32], strides = [1, 1]} : vector<2x128xf32> to vector<2x32xf32>
    %208 = arith.negf %207 : vector<2x32xf32>
    %209 = math.exp %208 : vector<2x32xf32>
    %cst_45 = arith.constant 1.000000e+00 : f32
    %210 = vector.broadcast %cst_45 : f32 to vector<2x32xf32>
    %211 = arith.addf %210, %209 : vector<2x32xf32>
    %212 = arith.divf %210, %211 : vector<2x32xf32>
    %213 = vector.extract_strided_slice %206 {offsets = [0, 32], sizes = [2, 32], strides = [1, 1]} : vector<2x128xf32> to vector<2x32xf32>
    %214 = arith.negf %213 : vector<2x32xf32>
    %215 = math.exp %214 : vector<2x32xf32>
    %cst_46 = arith.constant 1.000000e+00 : f32
    %216 = vector.broadcast %cst_46 : f32 to vector<2x32xf32>
    %217 = arith.addf %216, %215 : vector<2x32xf32>
    %218 = arith.divf %216, %217 : vector<2x32xf32>
    %219 = vector.extract_strided_slice %206 {offsets = [0, 64], sizes = [2, 32], strides = [1, 1]} : vector<2x128xf32> to vector<2x32xf32>
    %220 = math.tanh %219 : vector<2x32xf32>
    %221 = vector.extract_strided_slice %206 {offsets = [0, 96], sizes = [2, 32], strides = [1, 1]} : vector<2x128xf32> to vector<2x32xf32>
    %222 = arith.negf %221 : vector<2x32xf32>
    %223 = math.exp %222 : vector<2x32xf32>
    %cst_47 = arith.constant 1.000000e+00 : f32
    %224 = vector.broadcast %cst_47 : f32 to vector<2x32xf32>
    %225 = arith.addf %224, %223 : vector<2x32xf32>
    %226 = arith.divf %224, %225 : vector<2x32xf32>
    %227 = arith.mulf %218, %200 : vector<2x32xf32>
    %228 = arith.mulf %212, %220 : vector<2x32xf32>
    %229 = arith.addf %227, %228 : vector<2x32xf32>
    %230 = math.tanh %229 : vector<2x32xf32>
    %231 = arith.mulf %226, %230 : vector<2x32xf32>
    %232 = vector.extract_strided_slice %83 {offsets = [0, 5, 0], sizes = [2, 1, 128], strides = [1, 1, 1]} : vector<2x8x128xf32> to vector<2x1x128xf32>
    %233 = vector.shape_cast %232 : vector<2x1x128xf32> to vector<2x128xf32>
    %cst_48 = arith.constant dense<0.000000e+00> : vector<2x128xf32>
    %234 = tpu.matmul %231, %84, %cst_48 {dimension_numbers = #tpu.dot_dimension_numbers<[1], [0], [0], [1], [0, 0, 1, 1], [], []>} : vector<2x32xf32>, vector<32x128xf32>, vector<2x128xf32> -> vector<2x128xf32>
    %235 = arith.addf %233, %234 : vector<2x128xf32>
    %236 = vector.extract_strided_slice %235 {offsets = [0, 0], sizes = [2, 32], strides = [1, 1]} : vector<2x128xf32> to vector<2x32xf32>
    %237 = arith.negf %236 : vector<2x32xf32>
    %238 = math.exp %237 : vector<2x32xf32>
    %cst_49 = arith.constant 1.000000e+00 : f32
    %239 = vector.broadcast %cst_49 : f32 to vector<2x32xf32>
    %240 = arith.addf %239, %238 : vector<2x32xf32>
    %241 = arith.divf %239, %240 : vector<2x32xf32>
    %242 = vector.extract_strided_slice %235 {offsets = [0, 32], sizes = [2, 32], strides = [1, 1]} : vector<2x128xf32> to vector<2x32xf32>
    %243 = arith.negf %242 : vector<2x32xf32>
    %244 = math.exp %243 : vector<2x32xf32>
    %cst_50 = arith.constant 1.000000e+00 : f32
    %245 = vector.broadcast %cst_50 : f32 to vector<2x32xf32>
    %246 = arith.addf %245, %244 : vector<2x32xf32>
    %247 = arith.divf %245, %246 : vector<2x32xf32>
    %248 = vector.extract_strided_slice %235 {offsets = [0, 64], sizes = [2, 32], strides = [1, 1]} : vector<2x128xf32> to vector<2x32xf32>
    %249 = math.tanh %248 : vector<2x32xf32>
    %250 = vector.extract_strided_slice %235 {offsets = [0, 96], sizes = [2, 32], strides = [1, 1]} : vector<2x128xf32> to vector<2x32xf32>
    %251 = arith.negf %250 : vector<2x32xf32>
    %252 = math.exp %251 : vector<2x32xf32>
    %cst_51 = arith.constant 1.000000e+00 : f32
    %253 = vector.broadcast %cst_51 : f32 to vector<2x32xf32>
    %254 = arith.addf %253, %252 : vector<2x32xf32>
    %255 = arith.divf %253, %254 : vector<2x32xf32>
    %256 = arith.mulf %247, %229 : vector<2x32xf32>
    %257 = arith.mulf %241, %249 : vector<2x32xf32>
    %258 = arith.addf %256, %257 : vector<2x32xf32>
    %259 = math.tanh %258 : vector<2x32xf32>
    %260 = arith.mulf %255, %259 : vector<2x32xf32>
    %261 = vector.extract_strided_slice %83 {offsets = [0, 6, 0], sizes = [2, 1, 128], strides = [1, 1, 1]} : vector<2x8x128xf32> to vector<2x1x128xf32>
    %262 = vector.shape_cast %261 : vector<2x1x128xf32> to vector<2x128xf32>
    %cst_52 = arith.constant dense<0.000000e+00> : vector<2x128xf32>
    %263 = tpu.matmul %260, %84, %cst_52 {dimension_numbers = #tpu.dot_dimension_numbers<[1], [0], [0], [1], [0, 0, 1, 1], [], []>} : vector<2x32xf32>, vector<32x128xf32>, vector<2x128xf32> -> vector<2x128xf32>
    %264 = arith.addf %262, %263 : vector<2x128xf32>
    %265 = vector.extract_strided_slice %264 {offsets = [0, 0], sizes = [2, 32], strides = [1, 1]} : vector<2x128xf32> to vector<2x32xf32>
    %266 = arith.negf %265 : vector<2x32xf32>
    %267 = math.exp %266 : vector<2x32xf32>
    %cst_53 = arith.constant 1.000000e+00 : f32
    %268 = vector.broadcast %cst_53 : f32 to vector<2x32xf32>
    %269 = arith.addf %268, %267 : vector<2x32xf32>
    %270 = arith.divf %268, %269 : vector<2x32xf32>
    %271 = vector.extract_strided_slice %264 {offsets = [0, 32], sizes = [2, 32], strides = [1, 1]} : vector<2x128xf32> to vector<2x32xf32>
    %272 = arith.negf %271 : vector<2x32xf32>
    %273 = math.exp %272 : vector<2x32xf32>
    %cst_54 = arith.constant 1.000000e+00 : f32
    %274 = vector.broadcast %cst_54 : f32 to vector<2x32xf32>
    %275 = arith.addf %274, %273 : vector<2x32xf32>
    %276 = arith.divf %274, %275 : vector<2x32xf32>
    %277 = vector.extract_strided_slice %264 {offsets = [0, 64], sizes = [2, 32], strides = [1, 1]} : vector<2x128xf32> to vector<2x32xf32>
    %278 = math.tanh %277 : vector<2x32xf32>
    %279 = vector.extract_strided_slice %264 {offsets = [0, 96], sizes = [2, 32], strides = [1, 1]} : vector<2x128xf32> to vector<2x32xf32>
    %280 = arith.negf %279 : vector<2x32xf32>
    %281 = math.exp %280 : vector<2x32xf32>
    %cst_55 = arith.constant 1.000000e+00 : f32
    %282 = vector.broadcast %cst_55 : f32 to vector<2x32xf32>
    %283 = arith.addf %282, %281 : vector<2x32xf32>
    %284 = arith.divf %282, %283 : vector<2x32xf32>
    %285 = arith.mulf %276, %258 : vector<2x32xf32>
    %286 = arith.mulf %270, %278 : vector<2x32xf32>
    %287 = arith.addf %285, %286 : vector<2x32xf32>
    %288 = math.tanh %287 : vector<2x32xf32>
    %289 = arith.mulf %284, %288 : vector<2x32xf32>
    %290 = vector.extract_strided_slice %83 {offsets = [0, 7, 0], sizes = [2, 1, 128], strides = [1, 1, 1]} : vector<2x8x128xf32> to vector<2x1x128xf32>
    %291 = vector.shape_cast %290 : vector<2x1x128xf32> to vector<2x128xf32>
    %cst_56 = arith.constant dense<0.000000e+00> : vector<2x128xf32>
    %292 = tpu.matmul %289, %84, %cst_56 {dimension_numbers = #tpu.dot_dimension_numbers<[1], [0], [0], [1], [0, 0, 1, 1], [], []>} : vector<2x32xf32>, vector<32x128xf32>, vector<2x128xf32> -> vector<2x128xf32>
    %293 = arith.addf %291, %292 : vector<2x128xf32>
    %294 = vector.extract_strided_slice %293 {offsets = [0, 0], sizes = [2, 32], strides = [1, 1]} : vector<2x128xf32> to vector<2x32xf32>
    %295 = arith.negf %294 : vector<2x32xf32>
    %296 = math.exp %295 : vector<2x32xf32>
    %cst_57 = arith.constant 1.000000e+00 : f32
    %297 = vector.broadcast %cst_57 : f32 to vector<2x32xf32>
    %298 = arith.addf %297, %296 : vector<2x32xf32>
    %299 = arith.divf %297, %298 : vector<2x32xf32>
    %300 = vector.extract_strided_slice %293 {offsets = [0, 32], sizes = [2, 32], strides = [1, 1]} : vector<2x128xf32> to vector<2x32xf32>
    %301 = arith.negf %300 : vector<2x32xf32>
    %302 = math.exp %301 : vector<2x32xf32>
    %cst_58 = arith.constant 1.000000e+00 : f32
    %303 = vector.broadcast %cst_58 : f32 to vector<2x32xf32>
    %304 = arith.addf %303, %302 : vector<2x32xf32>
    %305 = arith.divf %303, %304 : vector<2x32xf32>
    %306 = vector.extract_strided_slice %293 {offsets = [0, 64], sizes = [2, 32], strides = [1, 1]} : vector<2x128xf32> to vector<2x32xf32>
    %307 = math.tanh %306 : vector<2x32xf32>
    %308 = vector.extract_strided_slice %293 {offsets = [0, 96], sizes = [2, 32], strides = [1, 1]} : vector<2x128xf32> to vector<2x32xf32>
    %309 = arith.negf %308 : vector<2x32xf32>
    %310 = math.exp %309 : vector<2x32xf32>
    %cst_59 = arith.constant 1.000000e+00 : f32
    %311 = vector.broadcast %cst_59 : f32 to vector<2x32xf32>
    %312 = arith.addf %311, %310 : vector<2x32xf32>
    %313 = arith.divf %311, %312 : vector<2x32xf32>
    %314 = arith.mulf %305, %287 : vector<2x32xf32>
    %315 = arith.mulf %299, %307 : vector<2x32xf32>
    %316 = arith.addf %314, %315 : vector<2x32xf32>
    %317 = math.tanh %316 : vector<2x32xf32>
    %318 = arith.mulf %313, %317 : vector<2x32xf32>
    %c0_60 = arith.constant 0 : index
    %c0_61 = arith.constant 0 : index
    %319 = vector.load %arg12[%c0_60, %c0_61] : memref<32x2xf32, #tpu.memory_space<vmem>>, vector<32x2xf32>
    %cst_62 = arith.constant dense<0.000000e+00> : vector<2x2xf32>
    %320 = tpu.matmul %318, %319, %cst_62 {dimension_numbers = #tpu.dot_dimension_numbers<[1], [0], [0], [1], [0, 0, 1, 1], [], []>} : vector<2x32xf32>, vector<32x2xf32>, vector<2x2xf32> -> vector<2x2xf32>
    %c0_63 = arith.constant 0 : index
    %c0_64 = arith.constant 0 : index
    %321 = vector.load %arg13[%c0_63, %c0_64] : memref<1x2xf32, #tpu.memory_space<vmem>>, vector<1x2xf32>
    %322 = vector.broadcast %321 : vector<1x2xf32> to vector<2x2xf32>
    %323 = arith.addf %320, %322 : vector<2x2xf32>
    %c0_65 = arith.constant 0 : index
    %c0_66 = arith.constant 0 : index
    %324 = vector.load %arg14[%c0_65, %c0_66] : memref<2x2xf32, #tpu.memory_space<vmem>>, vector<2x2xf32>
    tpu.vector_store %arg14[%c0_65, %c0_66], %323 {strides = array<i32>} : memref<2x2xf32, #tpu.memory_space<vmem>>, vector<2x2xf32>,
    return
  }
  func.func @transform_0(%arg0: i32) -> (i32, i32, i32) {
    %c0_i32 = arith.constant 0 : i32
    %c0_i32_0 = arith.constant 0 : i32
    %c0_i32_1 = arith.constant 0 : i32
    return %arg0, %c0_i32, %c0_i32_0 : i32, i32, i32
  }
  func.func @transform_1(%arg0: i32) -> (i32, i32) {
    %c0_i32 = arith.constant 0 : i32
    %c0_i32_0 = arith.constant 0 : i32
    return %arg0, %c0_i32 : i32, i32
  }
  func.func @transform_2(%arg0: i32) -> (i32, i32) {
    %c0_i32 = arith.constant 0 : i32
    %c0_i32_0 = arith.constant 0 : i32
    %c0_i32_1 = arith.constant 0 : i32
    return %c0_i32, %c0_i32_0 : i32, i32
  }
  func.func @transform_3(%arg0: i32) -> (i32, i32) {
    %c0_i32 = arith.constant 0 : i32
    %c0_i32_0 = arith.constant 0 : i32
    %c0_i32_1 = arith.constant 0 : i32
    return %c0_i32, %c0_i32_0 : i32, i32
  }
  func.func @transform_4(%arg0: i32) -> (i32, i32) {
    %c0_i32 = arith.constant 0 : i32
    %c0_i32_0 = arith.constant 0 : i32
    %c0_i32_1 = arith.constant 0 : i32
    return %c0_i32, %c0_i32_0 : i32, i32
  }
  func.func @transform_5(%arg0: i32) -> (i32, i32) {
    %c0_i32 = arith.constant 0 : i32
    %c0_i32_0 = arith.constant 0 : i32
    %c0_i32_1 = arith.constant 0 : i32
    return %c0_i32, %c0_i32_0 : i32, i32
  }
  func.func @transform_6(%arg0: i32) -> (i32, i32) {
    %c0_i32 = arith.constant 0 : i32
    %c0_i32_0 = arith.constant 0 : i32
    %c0_i32_1 = arith.constant 0 : i32
    return %c0_i32, %c0_i32_0 : i32, i32
  }
  func.func @transform_7(%arg0: i32) -> (i32, i32) {
    %c0_i32 = arith.constant 0 : i32
    %c0_i32_0 = arith.constant 0 : i32
    %c0_i32_1 = arith.constant 0 : i32
    return %c0_i32, %c0_i32_0 : i32, i32
  }
  func.func @transform_8(%arg0: i32) -> (i32, i32) {
    %c0_i32 = arith.constant 0 : i32
    %c0_i32_0 = arith.constant 0 : i32
    %c0_i32_1 = arith.constant 0 : i32
    return %c0_i32, %c0_i32_0 : i32, i32
  }
  func.func @transform_9(%arg0: i32) -> (i32, i32) {
    %c0_i32 = arith.constant 0 : i32
    %c0_i32_0 = arith.constant 0 : i32
    %c0_i32_1 = arith.constant 0 : i32
    return %c0_i32, %c0_i32_0 : i32, i32
  }
  func.func @transform_10(%arg0: i32) -> (i32, i32) {
    %c0_i32 = arith.constant 0 : i32
    %c0_i32_0 = arith.constant 0 : i32
    %c0_i32_1 = arith.constant 0 : i32
    return %c0_i32, %c0_i32_0 : i32, i32
  }
  func.func @transform_11(%arg0: i32) -> (i32, i32) {
    %c0_i32 = arith.constant 0 : i32
    %c0_i32_0 = arith.constant 0 : i32
    %c0_i32_1 = arith.constant 0 : i32
    return %c0_i32, %c0_i32_0 : i32, i32
  }
  func.func @transform_12(%arg0: i32) -> (i32, i32) {
    %c0_i32 = arith.constant 0 : i32
    %c0_i32_0 = arith.constant 0 : i32
    %c0_i32_1 = arith.constant 0 : i32
    return %c0_i32, %c0_i32_0 : i32, i32
  }
  func.func @transform_13(%arg0: i32) -> (i32, i32) {
    %c0_i32 = arith.constant 0 : i32
    %c0_i32_0 = arith.constant 0 : i32
    return %arg0, %c0_i32 : i32, i32
  }
}

</mosaic_0001>

<llo_original>
// kernel: tpu_custom_call.1
$region0: #{tpu_custom_call.1}
  #allocation0 [shape = 'u32[]', space=smem, size = 0x4, offset = 0x4, fixed_abs, tag = 'smem constant byte address 0x4 - core index']
  #allocation1 [shape = 'u32[144,128]{1,0:T(1,128)}', space=vmem, size = 0x12000, scoped, tag = 'internal scratch']
  #allocation2 [shape = 'f32[1,1]{1,0:T(1,128)S(6)}', space=smem, size = 0x200, scoped, tag = 'scoped memory for tpu_custom_call.1']
  %s0 = inlined_call_operand.vmem [shape: f32[2,8,32], index: 0, kind: input, shape index: {}]
  %s1 = inlined_call_operand.vmem [shape: f32[2,256], index: 1, kind: input, shape index: {}]
  %s2 = inlined_call_operand.vmem [shape: f32[32,128], index: 2, kind: input, shape index: {}]
  %s3 = inlined_call_operand.vmem [shape: f32[1,128], index: 3, kind: input, shape index: {}]
  %s4 = inlined_call_operand.hbm [shape: f32[256,128], index: 4, kind: input, shape index: {}]
  %s5 = inlined_call_operand.vmem [shape: f32[1,128], index: 5, kind: input, shape index: {}]
  %s6 = inlined_call_operand.vmem [shape: f32[128,8], index: 6, kind: input, shape index: {}]
  %s7 = inlined_call_operand.<no memory space> [shape: f32[1,1], index: 7, kind: input, shape index: {}]
  %s8 = inlined_call_operand.vmem [shape: f32[32,128], index: 8, kind: input, shape index: {}]
  %s9 = inlined_call_operand.vmem [shape: f32[1,128], index: 9, kind: input, shape index: {}]
  %s10 = inlined_call_operand.vmem [shape: f32[32,128], index: 10, kind: input, shape index: {}]
  %s11 = inlined_call_operand.vmem [shape: f32[32,2], index: 11, kind: input, shape index: {}]
  %s12 = inlined_call_operand.vmem [shape: f32[1,2], index: 12, kind: input, shape index: {}]
  %s13 = inlined_call_operand.hbm [shape: f32[2,2], index: 13, kind: output, shape index: {}]
  %s14 = sld [smem:[#allocation0]]
  $region66: #{tpu_custom_call.1} parent=0
    _
  %s16 = ssub.s32 1, %s14
  %s17 = scalar_select 0, %s16, %s14
  %18 = sst [smem:[#allocation2]] %s7
  $region1: #{tpu_custom_call.1} parent=0
    #allocation3 [shape = 'u8[131072]{0}', space=vmem, size = 0x20000, scoped, tag = 'input window, operand 4, single buffered']
    #allocation4 [shape = 's32[1]{0}', space=sflag, size = 0x4, scoped, tag = 'scoped memory for tpu_custom_call.1']
    #allocation5 [shape = 's32[1]{0}', space=sflag, size = 0x4, scoped, tag = 'scoped memory for tpu_custom_call.1']
    #allocation6 [shape = 'u8[1024]{0}', space=vmem, size = 0x400, scoped, tag = 'output window, operand 0, single buffered']
    %19 = vsyncpa [#allocation4], 0
    %20 = vsyncpa [#allocation5], 0
    // Predicated region
    $region2: #{tpu_custom_call.1} parent=1 // pred_check
      _
    $region3: #{tpu_custom_call.1} parent=1 // pred_check_branch
      %22 = sbr.rel (0) target = $region5
    $region4: #{tpu_custom_call.1} parent=1 // pred_region
      _
    $region5: #{tpu_custom_call.1} parent=1 // pred_fallthru
      _
    // Predicated region
    $region6: #{tpu_custom_call.1} parent=1 // pred_check
      _
    $region7: #{tpu_custom_call.1} parent=1 // pred_check_branch
      %24 = sbr.rel (0) target = $region9
    $region8: #{tpu_custom_call.1} parent=1 // pred_region
      _
    $region9: #{tpu_custom_call.1} parent=1 // pred_fallthru
      _
    // Predicated region
    $region10: #{tpu_custom_call.1} parent=1 // pred_check
      _
    $region11: #{tpu_custom_call.1} parent=1 // pred_check_branch
      %26 = sbr.rel (0) target = $region13
    $region12: #{tpu_custom_call.1} parent=1 // pred_region
      _
    $region13: #{tpu_custom_call.1} parent=1 // pred_fallthru
      _
    // Predicated region
    $region14: #{tpu_custom_call.1} parent=1 // pred_check
      _
    $region15: #{tpu_custom_call.1} parent=1 // pred_check_branch
      %28 = sbr.rel (0) target = $region17
    $region16: #{tpu_custom_call.1} parent=1 // pred_region
      _
    $region17: #{tpu_custom_call.1} parent=1 // pred_fallthru
      _
    // Predicated region
    $region18: #{tpu_custom_call.1} parent=1 // pred_check
      _
    $region19: #{tpu_custom_call.1} parent=1 // pred_check_branch
      %30 = sbr.rel (0) target = $region21
    $region20: #{tpu_custom_call.1} parent=1 // pred_region
      %s32 = ssub.s32 4096, 4096
      %33 = vsyncadd [#allocation4], %s32
      %s34 = sshll.u32 [#allocation3], 4
      %s35 = int_to_ptr.vmem [resolvable:$true] %s34
      %40 = dma.hbm_to_vmem [thread:$0]  %s4, 4096, %s35, [#allocation4], 128, 128, 8
    $region21: #{tpu_custom_call.1} parent=1 // pred_fallthru
      _
    // Predicated region
    $region22: #{tpu_custom_call.1} parent=1 // pred_check
      _
    $region23: #{tpu_custom_call.1} parent=1 // pred_check_branch
      %42 = sbr.rel (0) target = $region25
    $region24: #{tpu_custom_call.1} parent=1 // pred_region
      _
    $region25: #{tpu_custom_call.1} parent=1 // pred_fallthru
      _
    // Predicated region
    $region26: #{tpu_custom_call.1} parent=1 // pred_check
      _
    $region27: #{tpu_custom_call.1} parent=1 // pred_check_branch
      %44 = sbr.rel (0) target = $region29
    $region28: #{tpu_custom_call.1} parent=1 // pred_region
      _
    $region29: #{tpu_custom_call.1} parent=1 // pred_fallthru
      _
    // Predicated region
    $region30: #{tpu_custom_call.1} parent=1 // pred_check
      _
    $region31: #{tpu_custom_call.1} parent=1 // pred_check_branch
      %46 = sbr.rel (0) target = $region33
    $region32: #{tpu_custom_call.1} parent=1 // pred_region
      _
    $region33: #{tpu_custom_call.1} parent=1 // pred_fallthru
      _
    // Predicated region
    $region34: #{tpu_custom_call.1} parent=1 // pred_check
      _
    $region35: #{tpu_custom_call.1} parent=1 // pred_check_branch
      %48 = sbr.rel (0) target = $region37
    $region36: #{tpu_custom_call.1} parent=1 // pred_region
      _
    $region37: #{tpu_custom_call.1} parent=1 // pred_fallthru
      _
    // Predicated region
    $region38: #{tpu_custom_call.1} parent=1 // pred_check
      _
    $region39: #{tpu_custom_call.1} parent=1 // pred_check_branch
      %50 = sbr.rel (0) target = $region41
    $region40: #{tpu_custom_call.1} parent=1 // pred_region
      _
    $region41: #{tpu_custom_call.1} parent=1 // pred_fallthru
      _
    // Predicated region
    $region42: #{tpu_custom_call.1} parent=1 // pred_check
      _
    $region43: #{tpu_custom_call.1} parent=1 // pred_check_branch
      %52 = sbr.rel (0) target = $region45
    $region44: #{tpu_custom_call.1} parent=1 // pred_region
      _
    $region45: #{tpu_custom_call.1} parent=1 // pred_fallthru
      _
    // Predicated region
    $region46: #{tpu_custom_call.1} parent=1 // pred_check
      _
    $region47: #{tpu_custom_call.1} parent=1 // pred_check_branch
      %54 = sbr.rel (0) target = $region49
    $region48: #{tpu_custom_call.1} parent=1 // pred_region
      _
    $region49: #{tpu_custom_call.1} parent=1 // pred_fallthru
      _
    // Predicated region
    $region50: #{tpu_custom_call.1} parent=1 // pred_check
      _
    $region51: #{tpu_custom_call.1} parent=1 // pred_check_branch
      %56 = sbr.rel (0) target = $region53
    $region52: #{tpu_custom_call.1} parent=1 // pred_region
      _
    $region53: #{tpu_custom_call.1} parent=1 // pred_fallthru
      _
    // Predicated region
    $region54: #{tpu_custom_call.1} parent=1 // pred_check
      _
    $region55: #{tpu_custom_call.1} parent=1 // pred_check_branch
      %58 = sbr.rel (0) target = $region57
    $region56: #{tpu_custom_call.1} parent=1 // pred_region
      %59 = dma.done [#allocation4], 4096
    $region57: #{tpu_custom_call.1} parent=1 // pred_fallthru
      _
    %v60 = vld [vmem:[%s0] sm:$0xff]
    %v61 = vld [vmem:[%s0 + $0x8] sm:$0xff]
    %v62 = vld [vmem:[%s1] sm:$0xf]
    %v63 = vld [vmem:[%s2] sm:$0xff]
    %v64 = vld [vmem:[%s2 + $0x8] sm:$0xff]
    %v65 = vld [vmem:[%s2 + $0x10] sm:$0xff]
    %v66 = vld [vmem:[%s2 + $0x18] sm:$0xff]
    %v67 = vld [vmem:[%s3] sm:$0x1]
    %v69 = vlaneseq
    %v70 = vshrl.u32 %v69, 7
    %v71 = vsub.s32 0, %v70
    %v72 = vrot.slane %v67, %v71
    %vm74 = vcmask 261120
    %v76 = vsel %vm74, %v60, 0
    %v79 = vsel %vm74, %v61, 0
    %81 = vmatprep.subr.mxu0 0.0
    %82 = vmatpush1.msra.mxu0 %v63
    %83 = vmatprep.subr.mxu0 0.0
    %84 = vmatpush1.msra.mxu0 %v64
    %85 = vmatprep.subr.mxu0 0.0
    %86 = vmatpush1.msra.mxu0 %v65
    %87 = vmatprep.subr.mxu0 0.0
    %88 = vmatpush1.msra.mxu0 %v66
    %89 = vmatprep.subr.mxu0 0.0
    %90 = vmatpush1.msra.mxu0 0.0
    %91 = vmatprep.subr.mxu0 0.0
    %92 = vmatpush1.msra.mxu0 0.0
    %93 = vmatprep.subr.mxu0 0.0
    %94 = vmatpush1.msra.mxu0 0.0
    %95 = vmatprep.subr.mxu0 0.0
    %96 = vmatpush1.msra.mxu0 0.0
    %97 = vmatprep.subr.mxu0 0.0
    %98 = vmatpush1.msra.mxu0 0.0
    %99 = vmatprep.subr.mxu0 0.0
    %100 = vmatpush1.msra.mxu0 0.0
    %101 = vmatprep.subr.mxu0 0.0
    %102 = vmatpush1.msra.mxu0 0.0
    %103 = vmatprep.subr.mxu0 0.0
    %104 = vmatpush1.msra.mxu0 0.0
    %105 = vmatprep.subr.mxu0 0.0
    %106 = vmatpush1.msra.mxu0 0.0
    %107 = vmatprep.subr.mxu0 0.0
    %108 = vmatpush1.msra.mxu0 0.0
    %109 = vmatprep.subr.mxu0 0.0
    %110 = vmatpush1.msra.mxu0 0.0
    %111 = vmatprep.subr.mxu0 0.0
    %112 = vmatpush1.msra.mxu0 0.0
    %113 = vmatprep.subr.mxu0 0.0
    %114 = vmatpush1.msra.mxu0 0.0
    %115 = vmatprep.subr.mxu0 0.0
    %116 = vmatpush1.msra.mxu0 0.0
    %117 = vmatprep.subr.mxu0 0.0
    %118 = vmatpush1.msra.mxu0 0.0
    %119 = vmatprep.subr.mxu0 0.0
    %120 = vmatpush1.msra.mxu0 0.0
    %121 = vmatprep.subr.mxu0 0.0
    %122 = vmatpush1.msra.mxu0 0.0
    %123 = vmatprep.subr.mxu0 0.0
    %124 = vmatpush1.msra.mxu0 0.0
    %125 = vmatprep.subr.mxu0 0.0
    %126 = vmatpush1.msra.mxu0 0.0
    %127 = vmatprep.subr.mxu0 0.0
    %128 = vmatpush1.msra.mxu0 0.0
    %129 = vmatprep.subr.mxu0 0.0
    %130 = vmatpush1.msra.mxu0 0.0
    %131 = vmatprep.subr.mxu0 0.0
    %132 = vmatpush1.msra.mxu0 0.0
    %133 = vmatprep.subr.mxu0 0.0
    %134 = vmatpush1.msra.mxu0 0.0
    %135 = vmatprep.subr.mxu0 0.0
    %136 = vmatpush1.msra.mxu0 0.0
    %137 = vmatprep.subr.mxu0 0.0
    %138 = vmatpush1.msra.mxu0 0.0
    %139 = vmatprep.subr.mxu0 0.0
    %140 = vmatpush1.msra.mxu0 0.0
    %141 = vmatprep.subr.mxu0 0.0
    %142 = vmatpush1.msra.mxu0 0.0
    %143 = vmatprep.subr.mxu0 0.0
    %144 = vmatpush1.msra.mxu0 0.0
    %145 = vmatprep.mubr.f32.mxu0 0.0
    %146 = vmatmul.mubr.f32.gmra.mrb[0].mxu0 %v76
    %v147 = vpop.f32.mrb[0].mxu0
    %v148 = vadd.f32 %v72, %v147
    %v149 = vpop.f32.mrb[0].mxu0
    %150 = vmatprep.mubr.f32.mxu0 0.0
    %151 = vmatmul.mubr.f32.gmra.mrb[0].mxu0 %v79
    %v152 = vpop.f32.mrb[0].mxu0
    %v153 = vadd.f32 %v72, %v152
    %v154 = vpop.f32.mrb[0].mxu0
    %155 = vdwg.mxu0
    %v156 = vld [vmem:[#allocation3] sm:$0xff]
    %v157 = vld [vmem:[#allocation3 + $0x8] sm:$0xff]
    %v158 = vld [vmem:[#allocation3 + $0x10] sm:$0xff]
    %v159 = vld [vmem:[#allocation3 + $0x18] sm:$0xff]
    %v160 = vld [vmem:[#allocation3 + $0x20] sm:$0xff]
    %v161 = vld [vmem:[#allocation3 + $0x28] sm:$0xff]
    %v162 = vld [vmem:[#allocation3 + $0x30] sm:$0xff]
    %v163 = vld [vmem:[#allocation3 + $0x38] sm:$0xff]
    %v164 = vld [vmem:[#allocation3 + $0x40] sm:$0xff]
    %v165 = vld [vmem:[#allocation3 + $0x48] sm:$0xff]
    %v166 = vld [vmem:[#allocation3 + $0x50] sm:$0xff]
    %v167 = vld [vmem:[#allocation3 + $0x58] sm:$0xff]
    %v168 = vld [vmem:[#allocation3 + $0x60] sm:$0xff]
    %v169 = vld [vmem:[#allocation3 + $0x68] sm:$0xff]
    %v170 = vld [vmem:[#allocation3 + $0x70] sm:$0xff]
    %v171 = vld [vmem:[#allocation3 + $0x78] sm:$0xff]
    %v172 = vld [vmem:[#allocation3 + $0x80] sm:$0xff]
    %v173 = vld [vmem:[#allocation3 + $0x88] sm:$0xff]
    %v174 = vld [vmem:[#allocation3 + $0x90] sm:$0xff]
    %v175 = vld [vmem:[#allocation3 + $0x98] sm:$0xff]
    %v176 = vld [vmem:[#allocation3 + $0xa0] sm:$0xff]
    %v177 = vld [vmem:[#allocation3 + $0xa8] sm:$0xff]
    %v178 = vld [vmem:[#allocation3 + $0xb0] sm:$0xff]
    %v179 = vld [vmem:[#allocation3 + $0xb8] sm:$0xff]
    %v180 = vld [vmem:[#allocation3 + $0xc0] sm:$0xff]
    %v181 = vld [vmem:[#allocation3 + $0xc8] sm:$0xff]
    %v182 = vld [vmem:[#allocation3 + $0xd0] sm:$0xff]
    %v183 = vld [vmem:[#allocation3 + $0xd8] sm:$0xff]
    %v184 = vld [vmem:[#allocation3 + $0xe0] sm:$0xff]
    %v185 = vld [vmem:[#allocation3 + $0xe8] sm:$0xff]
    %v186 = vld [vmem:[#allocation3 + $0xf0] sm:$0xff]
    %v187 = vld [vmem:[#allocation3 + $0xf8] sm:$0xff]
    %v188 = vld [vmem:[%s5] sm:$0x1]
    %v190 = vlaneseq
    %v191 = vshrl.u32 %v190, 7
    %v192 = vsub.s32 0, %v191
    %v193 = vrot.slane %v188, %v192
    %v197 = vunpack.c.l.s4 1983009808
    %v198 = vunpack.c.0.s8 %v197
    %v199 = vlaneseq
    %v200 = vshrl.u32 %v199, 7
    %v201 = vsub.s32 %v198, %v200
    %v202 = vrot.slane %v62, %v201
    %v203 = vcombine.high %v202, %v202
    %206 = vmatprep.subr.mxu0 0.0
    %207 = vmatpush1.msra.mxu0 %v156
    %208 = vmatprep.subr.mxu0 0.0
    %209 = vmatpush1.msra.mxu0 %v157
    %210 = vmatprep.subr.mxu0 0.0
    %211 = vmatpush1.msra.mxu0 %v158
    %212 = vmatprep.subr.mxu0 0.0
    %213 = vmatpush1.msra.mxu0 %v159
    %214 = vmatprep.subr.mxu0 0.0
    %215 = vmatpush1.msra.mxu0 %v160
    %216 = vmatprep.subr.mxu0 0.0
    %217 = vmatpush1.msra.mxu0 %v161
    %218 = vmatprep.subr.mxu0 0.0
    %219 = vmatpush1.msra.mxu0 %v162
    %220 = vmatprep.subr.mxu0 0.0
    %221 = vmatpush1.msra.mxu0 %v163
    %222 = vmatprep.subr.mxu0 0.0
    %223 = vmatpush1.msra.mxu0 %v164
    %224 = vmatprep.subr.mxu0 0.0
    %225 = vmatpush1.msra.mxu0 %v165
    %226 = vmatprep.subr.mxu0 0.0
    %227 = vmatpush1.msra.mxu0 %v166
    %228 = vmatprep.subr.mxu0 0.0
    %229 = vmatpush1.msra.mxu0 %v167
    %230 = vmatprep.subr.mxu0 0.0
    %231 = vmatpush1.msra.mxu0 %v168
    %232 = vmatprep.subr.mxu0 0.0
    %233 = vmatpush1.msra.mxu0 %v169
    %234 = vmatprep.subr.mxu0 0.0
    %235 = vmatpush1.msra.mxu0 %v170
    %236 = vmatprep.subr.mxu0 0.0
    %237 = vmatpush1.msra.mxu0 %v171
    %238 = vmatprep.subr.mxu0 0.0
    %239 = vmatpush1.msra.mxu0 %v172
    %240 = vmatprep.subr.mxu0 0.0
    %241 = vmatpush1.msra.mxu0 %v173
    %242 = vmatprep.subr.mxu0 0.0
    %243 = vmatpush1.msra.mxu0 %v174
    %244 = vmatprep.subr.mxu0 0.0
    %245 = vmatpush1.msra.mxu0 %v175
    %246 = vmatprep.subr.mxu0 0.0
    %247 = vmatpush1.msra.mxu0 %v176
    %248 = vmatprep.subr.mxu0 0.0
    %249 = vmatpush1.msra.mxu0 %v177
    %250 = vmatprep.subr.mxu0 0.0
    %251 = vmatpush1.msra.mxu0 %v178
    %252 = vmatprep.subr.mxu0 0.0
    %253 = vmatpush1.msra.mxu0 %v179
    %254 = vmatprep.subr.mxu0 0.0
    %255 = vmatpush1.msra.mxu0 %v180
    %256 = vmatprep.subr.mxu0 0.0
    %257 = vmatpush1.msra.mxu0 %v181
    %258 = vmatprep.subr.mxu0 0.0
    %259 = vmatpush1.msra.mxu0 %v182
    %260 = vmatprep.subr.mxu0 0.0
    %261 = vmatpush1.msra.mxu0 %v183
    %262 = vmatprep.subr.mxu0 0.0
    %263 = vmatpush1.msra.mxu0 %v184
    %264 = vmatprep.subr.mxu0 0.0
    %265 = vmatpush1.msra.mxu0 %v185
    %266 = vmatprep.subr.mxu0 0.0
    %267 = vmatpush1.msra.mxu0 %v186
    %268 = vmatprep.subr.mxu0 0.0
    %269 = vmatpush1.msra.mxu0 %v187
    %270 = vmatprep.mubr.f32.mxu0 %v203
    %271 = vmatmul.mubr.f32.gmra.mrb[0].mxu0 %v202
    %v272 = vpop.f32.mrb[0].mxu0
    %v273 = vadd.f32 %v193, %v272
    %v274 = vpop.f32.mrb[0].mxu0
    %275 = vdwg.mxu0
    %v278 = vunpack.c.l.s4 1966171168
    %v279 = vunpack.c.0.s8 %v278
    %v280 = vlaneseq
    %v281 = vshrl.u32 %v280, 7
    %v282 = vsub.s32 %v279, %v281
    %v283 = vrot.slane %v273, %v282
    %v284 = vcombine.high %v283, %v283
    %v286 = vunpack.c.l.s4 1966171168
    %v287 = vunpack.c.0.s8 %v286
    %v288 = vlaneseq
    %v289 = vshrl.u32 %v288, 7
    %v290 = vsub.s32 %v287, %v289
    %v291 = vrot.slane %v283, %v290
    %v293 = vunpack.c.l.s4 1966171168
    %v294 = vunpack.c.0.s8 %v293
    %v295 = vlaneseq
    %v296 = vshrl.u32 %v295, 7
    %v297 = vsub.s32 %v294, %v296
    %v298 = vrot.slane %v284, %v297
    %v299 = vlaneseq
    %v300 = vshrl.u32 %v299, 7
    %v301 = vsub.s32 0, %v300
    %v302 = vrot.slane %v291, %v301
    %v303 = vlaneseq
    %v304 = vshrl.u32 %v303, 7
    %v305 = vsub.s32 0, %v304
    %v306 = vrot.slane %v298, %v305
    %v309 = vadd.f32 %v148, %v302
    %v310 = vadd.f32 %v153, %v306
    %v311 = vtanh.pop %v309
    %v312 = vtanh.pop %v310
    %v313 = vld [vmem:[%s6] sm:$0xff]
    %v314 = vld [vmem:[%s6 + $0x8] sm:$0xff]
    %v315 = vld [vmem:[%s6 + $0x10] sm:$0xff]
    %v316 = vld [vmem:[%s6 + $0x18] sm:$0xff]
    %v317 = vld [vmem:[%s6 + $0x20] sm:$0xff]
    %v318 = vld [vmem:[%s6 + $0x28] sm:$0xff]
    %v319 = vld [vmem:[%s6 + $0x30] sm:$0xff]
    %v320 = vld [vmem:[%s6 + $0x38] sm:$0xff]
    %v321 = vld [vmem:[%s6 + $0x40] sm:$0xff]
    %v322 = vld [vmem:[%s6 + $0x48] sm:$0xff]
    %v323 = vld [vmem:[%s6 + $0x50] sm:$0xff]
    %v324 = vld [vmem:[%s6 + $0x58] sm:$0xff]
    %v325 = vld [vmem:[%s6 + $0x60] sm:$0xff]
    %v326 = vld [vmem:[%s6 + $0x68] sm:$0xff]
    %v327 = vld [vmem:[%s6 + $0x70] sm:$0xff]
    %v328 = vld [vmem:[%s6 + $0x78] sm:$0xff]
    %s329 = sld [smem:[#allocation2]]
    %v330 = vstv %s329
    %331 = vmatprep.subr.mxu0 0.0
    %332 = vmatpush1.msra.mxu0 %v313
    %333 = vmatprep.subr.mxu0 0.0
    %334 = vmatpush1.msra.mxu0 %v314
    %335 = vmatprep.subr.mxu0 0.0
    %336 = vmatpush1.msra.mxu0 %v315
    %337 = vmatprep.subr.mxu0 0.0
    %338 = vmatpush1.msra.mxu0 %v316
    %339 = vmatprep.subr.mxu0 0.0
    %340 = vmatpush1.msra.mxu0 %v317
    %341 = vmatprep.subr.mxu0 0.0
    %342 = vmatpush1.msra.mxu0 %v318
    %343 = vmatprep.subr.mxu0 0.0
    %344 = vmatpush1.msra.mxu0 %v319
    %345 = vmatprep.subr.mxu0 0.0
    %346 = vmatpush1.msra.mxu0 %v320
    %347 = vmatprep.subr.mxu0 0.0
    %348 = vmatpush1.msra.mxu0 %v321
    %349 = vmatprep.subr.mxu0 0.0
    %350 = vmatpush1.msra.mxu0 %v322
    %351 = vmatprep.subr.mxu0 0.0
    %352 = vmatpush1.msra.mxu0 %v323
    %353 = vmatprep.subr.mxu0 0.0
    %354 = vmatpush1.msra.mxu0 %v324
    %355 = vmatprep.subr.mxu0 0.0
    %356 = vmatpush1.msra.mxu0 %v325
    %357 = vmatprep.subr.mxu0 0.0
    %358 = vmatpush1.msra.mxu0 %v326
    %359 = vmatprep.subr.mxu0 0.0
    %360 = vmatpush1.msra.mxu0 %v327
    %361 = vmatprep.subr.mxu0 0.0
    %362 = vmatpush1.msra.mxu0 %v328
    %363 = vmatprep.subr.mxu0 0.0
    %364 = vmatpush1.msra.mxu0 0.0
    %365 = vmatprep.subr.mxu0 0.0
    %366 = vmatpush1.msra.mxu0 0.0
    %367 = vmatprep.subr.mxu0 0.0
    %368 = vmatpush1.msra.mxu0 0.0
    %369 = vmatprep.subr.mxu0 0.0
    %370 = vmatpush1.msra.mxu0 0.0
    %371 = vmatprep.subr.mxu0 0.0
    %372 = vmatpush1.msra.mxu0 0.0
    %373 = vmatprep.subr.mxu0 0.0
    %374 = vmatpush1.msra.mxu0 0.0
    %375 = vmatprep.subr.mxu0 0.0
    %376 = vmatpush1.msra.mxu0 0.0
    %377 = vmatprep.subr.mxu0 0.0
    %378 = vmatpush1.msra.mxu0 0.0
    %379 = vmatprep.subr.mxu0 0.0
    %380 = vmatpush1.msra.mxu0 0.0
    %381 = vmatprep.subr.mxu0 0.0
    %382 = vmatpush1.msra.mxu0 0.0
    %383 = vmatprep.subr.mxu0 0.0
    %384 = vmatpush1.msra.mxu0 0.0
    %385 = vmatprep.subr.mxu0 0.0
    %386 = vmatpush1.msra.mxu0 0.0
    %387 = vmatprep.subr.mxu0 0.0
    %388 = vmatpush1.msra.mxu0 0.0
    %389 = vmatprep.subr.mxu0 0.0
    %390 = vmatpush1.msra.mxu0 0.0
    %391 = vmatprep.subr.mxu0 0.0
    %392 = vmatpush1.msra.mxu0 0.0
    %393 = vmatprep.subr.mxu0 0.0
    %394 = vmatpush1.msra.mxu0 0.0
    %395 = vmatprep.mubr.f32.mxu0 0.0
    %396 = vmatmul.mubr.f32.gmra.mrb[0].mxu0 %v311
    %v397 = vpop.f32.mrb[0].mxu0
    %v398 = vadd.f32 %v330, %v397
    %v399 = vpop.f32.mrb[0].mxu0
    %400 = vmatprep.mubr.f32.mxu0 0.0
    %401 = vmatmul.mubr.f32.gmra.mrb[0].mxu0 %v312
    %v402 = vpop.f32.mrb[0].mxu0
    %v403 = vadd.f32 %v330, %v402
    %v404 = vpop.f32.mrb[0].mxu0
    %405 = vdwg.mxu0
    %v406 = vxor.u32 %v398, 2147483648
    %v407 = vxor.u32 %v403, 2147483648
    %v408 = vmul.f32 %v406, 1.442695
    %v409 = vpow.pop %v408
    %v410 = vmul.f32 %v407, 1.442695
    %v411 = vpow.pop %v410
    %v412 = vadd.f32 %v409, 1.0
    %v413 = vadd.f32 %v411, 1.0
    %v414 = vrcp.pop %v412
    %v415 = vmul.f32 1.0, %v414
    %v416 = vrcp.pop %v413
    %v417 = vmul.f32 1.0, %v416
    %419 = vset.pattern.permute.xlu0 0
    %420 = vperm.xlu0 %419, %v415
    %v421 = vpop.permute.xlu0 %420
    %424 = vset.pattern.permute.xlu0 0
    %425 = vperm.xlu0 %424, %v417
    %v426 = vpop.permute.xlu0 %425
    %v428 = vlaneseq
    %v429 = vshrl.u32 %v428, 7
    %v430 = vsub.s32 0, %v429
    %v431 = vrot.slane %v60, %v430
    %v432 = vlaneseq
    %v433 = vshrl.u32 %v432, 7
    %v434 = vsub.s32 0, %v433
    %v435 = vrot.slane %v61, %v434
    %v436 = vmul.f32 %v421, %v431
    %v437 = vmul.f32 %v426, %v435
    %438 = vset.pattern.permute.xlu0 1
    %439 = vperm.xlu0 %438, %v415
    %v440 = vpop.permute.xlu0 %439
    %442 = vset.pattern.permute.xlu0 1
    %443 = vperm.xlu0 %442, %v417
    %v444 = vpop.permute.xlu0 %443
    %v446 = vlaneseq
    %v447 = vshrl.u32 %v446, 7
    %v448 = vsub.s32 1, %v447
    %v449 = vrot.slane %v60, %v448
    %v450 = vlaneseq
    %v451 = vshrl.u32 %v450, 7
    %v452 = vsub.s32 1, %v451
    %v453 = vrot.slane %v61, %v452
    %v454 = vmul.f32 %v440, %v449
    %v455 = vmul.f32 %v444, %v453
    %v456 = vadd.f32 %v436, %v454
    %v457 = vadd.f32 %v437, %v455
    %458 = vset.pattern.permute.xlu0 2
    %459 = vperm.xlu0 %458, %v415
    %v460 = vpop.permute.xlu0 %459
    %462 = vset.pattern.permute.xlu0 2
    %463 = vperm.xlu0 %462, %v417
    %v464 = vpop.permute.xlu0 %463
    %v466 = vlaneseq
    %v467 = vshrl.u32 %v466, 7
    %v468 = vsub.s32 2, %v467
    %v469 = vrot.slane %v60, %v468
    %v470 = vlaneseq
    %v471 = vshrl.u32 %v470, 7
    %v472 = vsub.s32 2, %v471
    %v473 = vrot.slane %v61, %v472
    %v474 = vmul.f32 %v460, %v469
    %v475 = vmul.f32 %v464, %v473
    %v476 = vadd.f32 %v456, %v474
    %v477 = vadd.f32 %v457, %v475
    %478 = vset.pattern.permute.xlu0 3
    %479 = vperm.xlu0 %478, %v415
    %v480 = vpop.permute.xlu0 %479
    %482 = vset.pattern.permute.xlu0 3
    %483 = vperm.xlu0 %482, %v417
    %v484 = vpop.permute.xlu0 %483
    %v486 = vlaneseq
    %v487 = vshrl.u32 %v486, 7
    %v488 = vsub.s32 3, %v487
    %v489 = vrot.slane %v60, %v488
    %v490 = vlaneseq
    %v491 = vshrl.u32 %v490, 7
    %v492 = vsub.s32 3, %v491
    %v493 = vrot.slane %v61, %v492
    %v494 = vmul.f32 %v480, %v489
    %v495 = vmul.f32 %v484, %v493
    %v496 = vadd.f32 %v476, %v494
    %v497 = vadd.f32 %v477, %v495
    %498 = vset.pattern.permute.xlu0 4
    %499 = vperm.xlu0 %498, %v415
    %v500 = vpop.permute.xlu0 %499
    %502 = vset.pattern.permute.xlu0 4
    %503 = vperm.xlu0 %502, %v417
    %v504 = vpop.permute.xlu0 %503
    %v506 = vlaneseq
    %v507 = vshrl.u32 %v506, 7
    %v508 = vsub.s32 4, %v507
    %v509 = vrot.slane %v60, %v508
    %v510 = vlaneseq
    %v511 = vshrl.u32 %v510, 7
    %v512 = vsub.s32 4, %v511
    %v513 = vrot.slane %v61, %v512
    %v514 = vmul.f32 %v500, %v509
    %v515 = vmul.f32 %v504, %v513
    %v516 = vadd.f32 %v496, %v514
    %v517 = vadd.f32 %v497, %v515
    %518 = vset.pattern.permute.xlu0 5
    %519 = vperm.xlu0 %518, %v415
    %v520 = vpop.permute.xlu0 %519
    %522 = vset.pattern.permute.xlu0 5
    %523 = vperm.xlu0 %522, %v417
    %v524 = vpop.permute.xlu0 %523
    %v526 = vlaneseq
    %v527 = vshrl.u32 %v526, 7
    %v528 = vsub.s32 5, %v527
    %v529 = vrot.slane %v60, %v528
    %v530 = vlaneseq
    %v531 = vshrl.u32 %v530, 7
    %v532 = vsub.s32 5, %v531
    %v533 = vrot.slane %v61, %v532
    %v534 = vmul.f32 %v520, %v529
    %v535 = vmul.f32 %v524, %v533
    %v536 = vadd.f32 %v516, %v534
    %v537 = vadd.f32 %v517, %v535
    %538 = vset.pattern.permute.xlu0 6
    %539 = vperm.xlu0 %538, %v415
    %v540 = vpop.permute.xlu0 %539
    %542 = vset.pattern.permute.xlu0 6
    %543 = vperm.xlu0 %542, %v417
    %v544 = vpop.permute.xlu0 %543
    %v546 = vlaneseq
    %v547 = vshrl.u32 %v546, 7
    %v548 = vsub.s32 6, %v547
    %v549 = vrot.slane %v60, %v548
    %v550 = vlaneseq
    %v551 = vshrl.u32 %v550, 7
    %v552 = vsub.s32 6, %v551
    %v553 = vrot.slane %v61, %v552
    %v554 = vmul.f32 %v540, %v549
    %v555 = vmul.f32 %v544, %v553
    %v556 = vadd.f32 %v536, %v554
    %v557 = vadd.f32 %v537, %v555
    %558 = vset.pattern.permute.xlu0 7
    %559 = vperm.xlu0 %558, %v415
    %v560 = vpop.permute.xlu0 %559
    %562 = vset.pattern.permute.xlu0 7
    %563 = vperm.xlu0 %562, %v417
    %v564 = vpop.permute.xlu0 %563
    %v566 = vlaneseq
    %v567 = vshrl.u32 %v566, 7
    %v568 = vsub.s32 7, %v567
    %v569 = vrot.slane %v60, %v568
    %v570 = vlaneseq
    %v571 = vshrl.u32 %v570, 7
    %v572 = vsub.s32 7, %v571
    %v573 = vrot.slane %v61, %v572
    %v574 = vmul.f32 %v560, %v569
    %v575 = vmul.f32 %v564, %v573
    %v576 = vadd.f32 %v556, %v574
    %v577 = vadd.f32 %v557, %v575
    %v578 = vld [vmem:[%s8] sm:$0xff]
    %v579 = vld [vmem:[%s8 + $0x8] sm:$0xff]
    %v580 = vld [vmem:[%s8 + $0x10] sm:$0xff]
    %v581 = vld [vmem:[%s8 + $0x18] sm:$0xff]
    %v582 = vld [vmem:[%s9] sm:$0x1]
    %v584 = vlaneseq
    %v585 = vshrl.u32 %v584, 7
    %v586 = vsub.s32 0, %v585
    %v587 = vrot.slane %v582, %v586
    %v590 = vsel %vm74, %v576, 0
    %v593 = vsel %vm74, %v577, 0
    %595 = vmatprep.subr.mxu0 0.0
    %596 = vmatpush1.msra.mxu0 %v578
    %597 = vmatprep.subr.mxu0 0.0
    %598 = vmatpush1.msra.mxu0 %v579
    %599 = vmatprep.subr.mxu0 0.0
    %600 = vmatpush1.msra.mxu0 %v580
    %601 = vmatprep.subr.mxu0 0.0
    %602 = vmatpush1.msra.mxu0 %v581
    %603 = vmatprep.subr.mxu0 0.0
    %604 = vmatpush1.msra.mxu0 0.0
    %605 = vmatprep.subr.mxu0 0.0
    %606 = vmatpush1.msra.mxu0 0.0
    %607 = vmatprep.subr.mxu0 0.0
    %608 = vmatpush1.msra.mxu0 0.0
    %609 = vmatprep.subr.mxu0 0.0
    %610 = vmatpush1.msra.mxu0 0.0
    %611 = vmatprep.subr.mxu0 0.0
    %612 = vmatpush1.msra.mxu0 0.0
    %613 = vmatprep.subr.mxu0 0.0
    %614 = vmatpush1.msra.mxu0 0.0
    %615 = vmatprep.subr.mxu0 0.0
    %616 = vmatpush1.msra.mxu0 0.0
    %617 = vmatprep.subr.mxu0 0.0
    %618 = vmatpush1.msra.mxu0 0.0
    %619 = vmatprep.subr.mxu0 0.0
    %620 = vmatpush1.msra.mxu0 0.0
    %621 = vmatprep.subr.mxu0 0.0
    %622 = vmatpush1.msra.mxu0 0.0
    %623 = vmatprep.subr.mxu0 0.0
    %624 = vmatpush1.msra.mxu0 0.0
    %625 = vmatprep.subr.mxu0 0.0
    %626 = vmatpush1.msra.mxu0 0.0
    %627 = vmatprep.subr.mxu0 0.0
    %628 = vmatpush1.msra.mxu0 0.0
    %629 = vmatprep.subr.mxu0 0.0
    %630 = vmatpush1.msra.mxu0 0.0
    %631 = vmatprep.subr.mxu0 0.0
    %632 = vmatpush1.msra.mxu0 0.0
    %633 = vmatprep.subr.mxu0 0.0
    %634 = vmatpush1.msra.mxu0 0.0
    %635 = vmatprep.subr.mxu0 0.0
    %636 = vmatpush1.msra.mxu0 0.0
    %637 = vmatprep.subr.mxu0 0.0
    %638 = vmatpush1.msra.mxu0 0.0
    %639 = vmatprep.subr.mxu0 0.0
    %640 = vmatpush1.msra.mxu0 0.0
    %641 = vmatprep.subr.mxu0 0.0
    %642 = vmatpush1.msra.mxu0 0.0
    %643 = vmatprep.subr.mxu0 0.0
    %644 = vmatpush1.msra.mxu0 0.0
    %645 = vmatprep.subr.mxu0 0.0
    %646 = vmatpush1.msra.mxu0 0.0
    %647 = vmatprep.subr.mxu0 0.0
    %648 = vmatpush1.msra.mxu0 0.0
    %649 = vmatprep.subr.mxu0 0.0
    %650 = vmatpush1.msra.mxu0 0.0
    %651 = vmatprep.subr.mxu0 0.0
    %652 = vmatpush1.msra.mxu0 0.0
    %653 = vmatprep.subr.mxu0 0.0
    %654 = vmatpush1.msra.mxu0 0.0
    %655 = vmatprep.subr.mxu0 0.0
    %656 = vmatpush1.msra.mxu0 0.0
    %657 = vmatprep.subr.mxu0 0.0
    %658 = vmatpush1.msra.mxu0 0.0
    %659 = vmatprep.mubr.f32.mxu0 0.0
    %660 = vmatmul.mubr.f32.gmra.mrb[0].mxu0 %v590
    %v661 = vpop.f32.mrb[0].mxu0
    %v662 = vadd.f32 %v587, %v661
    %v663 = vpop.f32.mrb[0].mxu0
    %664 = vmatprep.mubr.f32.mxu0 0.0
    %665 = vmatmul.mubr.f32.gmra.mrb[0].mxu0 %v593
    %v666 = vpop.f32.mrb[0].mxu0
    %v667 = vadd.f32 %v587, %v666
    %v668 = vpop.f32.mrb[0].mxu0
    %669 = vdwg.mxu0
    %v670 = vld [vmem:[%s10] sm:$0xff]
    %v671 = vld [vmem:[%s10 + $0x8] sm:$0xff]
    %v672 = vld [vmem:[%s10 + $0x10] sm:$0xff]
    %v673 = vld [vmem:[%s10 + $0x18] sm:$0xff]
    %v675 = vsel %vm74, 0.0, 0
    %677 = vmatprep.subr.mxu0 0.0
    %678 = vmatpush1.msra.mxu0 %v670
    %679 = vmatprep.subr.mxu0 0.0
    %680 = vmatpush1.msra.mxu0 %v671
    %681 = vmatprep.subr.mxu0 0.0
    %682 = vmatpush1.msra.mxu0 %v672
    %683 = vmatprep.subr.mxu0 0.0
    %684 = vmatpush1.msra.mxu0 %v673
    %685 = vmatprep.subr.mxu0 0.0
    %686 = vmatpush1.msra.mxu0 0.0
    %687 = vmatprep.subr.mxu0 0.0
    %688 = vmatpush1.msra.mxu0 0.0
    %689 = vmatprep.subr.mxu0 0.0
    %690 = vmatpush1.msra.mxu0 0.0
    %691 = vmatprep.subr.mxu0 0.0
    %692 = vmatpush1.msra.mxu0 0.0
    %693 = vmatprep.subr.mxu0 0.0
    %694 = vmatpush1.msra.mxu0 0.0
    %695 = vmatprep.subr.mxu0 0.0
    %696 = vmatpush1.msra.mxu0 0.0
    %697 = vmatprep.subr.mxu0 0.0
    %698 = vmatpush1.msra.mxu0 0.0
    %699 = vmatprep.subr.mxu0 0.0
    %700 = vmatpush1.msra.mxu0 0.0
    %701 = vmatprep.subr.mxu0 0.0
    %702 = vmatpush1.msra.mxu0 0.0
    %703 = vmatprep.subr.mxu0 0.0
    %704 = vmatpush1.msra.mxu0 0.0
    %705 = vmatprep.subr.mxu0 0.0
    %706 = vmatpush1.msra.mxu0 0.0
    %707 = vmatprep.subr.mxu0 0.0
    %708 = vmatpush1.msra.mxu0 0.0
    %709 = vmatprep.subr.mxu0 0.0
    %710 = vmatpush1.msra.mxu0 0.0
    %711 = vmatprep.subr.mxu0 0.0
    %712 = vmatpush1.msra.mxu0 0.0
    %713 = vmatprep.subr.mxu0 0.0
    %714 = vmatpush1.msra.mxu0 0.0
    %715 = vmatprep.subr.mxu0 0.0
    %716 = vmatpush1.msra.mxu0 0.0
    %717 = vmatprep.subr.mxu0 0.0
    %718 = vmatpush1.msra.mxu0 0.0
    %719 = vmatprep.subr.mxu0 0.0
    %720 = vmatpush1.msra.mxu0 0.0
    %721 = vmatprep.subr.mxu0 0.0
    %722 = vmatpush1.msra.mxu0 0.0
    %723 = vmatprep.subr.mxu0 0.0
    %724 = vmatpush1.msra.mxu0 0.0
    %725 = vmatprep.subr.mxu0 0.0
    %726 = vmatpush1.msra.mxu0 0.0
    %727 = vmatprep.subr.mxu0 0.0
    %728 = vmatpush1.msra.mxu0 0.0
    %729 = vmatprep.subr.mxu0 0.0
    %730 = vmatpush1.msra.mxu0 0.0
    %731 = vmatprep.subr.mxu0 0.0
    %732 = vmatpush1.msra.mxu0 0.0
    %733 = vmatprep.subr.mxu0 0.0
    %734 = vmatpush1.msra.mxu0 0.0
    %735 = vmatprep.subr.mxu0 0.0
    %736 = vmatpush1.msra.mxu0 0.0
    %737 = vmatprep.subr.mxu0 0.0
    %738 = vmatpush1.msra.mxu0 0.0
    %739 = vmatprep.subr.mxu0 0.0
    %740 = vmatpush1.msra.mxu0 0.0
    %741 = vmatprep.mubr.f32.mxu0 0.0
    %742 = vmatmul.mubr.f32.gmra.mrb[0].mxu0 %v675
    %v743 = vpop.f32.mrb[0].mxu0
    %v744 = vadd.f32 0.0, %v743
    %v745 = vpop.f32.mrb[0].mxu0
    %746 = vdwg.mxu0
    %v748 = vrot.slane %v744, 1
    %v751 = vadd.f32 %v662, %v744
    %v752 = vadd.f32 %v667, %v748
    %v753 = vxor.u32 %v751, 2147483648
    %v754 = vxor.u32 %v752, 2147483648
    %v755 = vmul.f32 %v753, 1.442695
    %v756 = vpow.pop %v755
    %v757 = vmul.f32 %v754, 1.442695
    %v758 = vpow.pop %v757
    %v759 = vadd.f32 %v756, 1.0
    %v760 = vadd.f32 %v758, 1.0
    %v761 = vrcp.pop %v759
    %v762 = vmul.f32 1.0, %v761
    %v763 = vrcp.pop %v760
    %v764 = vmul.f32 1.0, %v763
    %v765 = vtanh.pop %v751
    %v766 = vtanh.pop %v752
    %v767 = vmul.f32 %v762, 0.0
    %v768 = vmul.f32 %v764, 0.0
    %771 = vrot.lane.b32.xlu0 %v765, 64
    %v772 = vpop.permute.xlu0 %771
    %773 = vrot.lane.b32.xlu0 %v766, 64
    %v774 = vpop.permute.xlu0 %773
    %v777 = vmul.f32 %v762, %v772
    %v778 = vmul.f32 %v764, %v774
    %781 = vrot.lane.b32.xlu0 %v777, 32
    %v782 = vpop.permute.xlu0 %781
    %783 = vrot.lane.b32.xlu0 %v778, 32
    %v784 = vpop.permute.xlu0 %783
    %v787 = vadd.f32 %v767, %v782
    %v788 = vadd.f32 %v768, %v784
    %v789 = vtanh.pop %v787
    %v790 = vtanh.pop %v788
    %793 = vrot.lane.b32.xlu0 %v789, 64
    %v794 = vpop.permute.xlu0 %793
    %795 = vrot.lane.b32.xlu0 %v790, 64
    %v796 = vpop.permute.xlu0 %795
    %v799 = vmul.f32 %v762, %v794
    %v800 = vmul.f32 %v764, %v796
    %v803 = vrot.slane %v800, 7
    %vm804 = vcmask 1041409
    %v805 = vsel %vm804, %v803, %v799
    %806 = vrot.lane.b32.xlu0 %v805, 32
    %v807 = vpop.permute.xlu0 %806
    %v808 = vsel %vm74, %v807, 0
    %810 = vmatprep.subr.mxu0 0.0
    %811 = vmatpush1.msra.mxu0 %v670
    %812 = vmatprep.subr.mxu0 0.0
    %813 = vmatpush1.msra.mxu0 %v671
    %814 = vmatprep.subr.mxu0 0.0
    %815 = vmatpush1.msra.mxu0 %v672
    %816 = vmatprep.subr.mxu0 0.0
    %817 = vmatpush1.msra.mxu0 %v673
    %818 = vmatprep.subr.mxu0 0.0
    %819 = vmatpush1.msra.mxu0 0.0
    %820 = vmatprep.subr.mxu0 0.0
    %821 = vmatpush1.msra.mxu0 0.0
    %822 = vmatprep.subr.mxu0 0.0
    %823 = vmatpush1.msra.mxu0 0.0
    %824 = vmatprep.subr.mxu0 0.0
    %825 = vmatpush1.msra.mxu0 0.0
    %826 = vmatprep.subr.mxu0 0.0
    %827 = vmatpush1.msra.mxu0 0.0
    %828 = vmatprep.subr.mxu0 0.0
    %829 = vmatpush1.msra.mxu0 0.0
    %830 = vmatprep.subr.mxu0 0.0
    %831 = vmatpush1.msra.mxu0 0.0
    %832 = vmatprep.subr.mxu0 0.0
    %833 = vmatpush1.msra.mxu0 0.0
    %834 = vmatprep.subr.mxu0 0.0
    %835 = vmatpush1.msra.mxu0 0.0
    %836 = vmatprep.subr.mxu0 0.0
    %837 = vmatpush1.msra.mxu0 0.0
    %838 = vmatprep.subr.mxu0 0.0
    %839 = vmatpush1.msra.mxu0 0.0
    %840 = vmatprep.subr.mxu0 0.0
    %841 = vmatpush1.msra.mxu0 0.0
    %842 = vmatprep.subr.mxu0 0.0
    %843 = vmatpush1.msra.mxu0 0.0
    %844 = vmatprep.subr.mxu0 0.0
    %845 = vmatpush1.msra.mxu0 0.0
    %846 = vmatprep.subr.mxu0 0.0
    %847 = vmatpush1.msra.mxu0 0.0
    %848 = vmatprep.subr.mxu0 0.0
    %849 = vmatpush1.msra.mxu0 0.0
    %850 = vmatprep.subr.mxu0 0.0
    %851 = vmatpush1.msra.mxu0 0.0
    %852 = vmatprep.subr.mxu0 0.0
    %853 = vmatpush1.msra.mxu0 0.0
    %854 = vmatprep.subr.mxu0 0.0
    %855 = vmatpush1.msra.mxu0 0.0
    %856 = vmatprep.subr.mxu0 0.0
    %857 = vmatpush1.msra.mxu0 0.0
    %858 = vmatprep.subr.mxu0 0.0
    %859 = vmatpush1.msra.mxu0 0.0
    %860 = vmatprep.subr.mxu0 0.0
    %861 = vmatpush1.msra.mxu0 0.0
    %862 = vmatprep.subr.mxu0 0.0
    %863 = vmatpush1.msra.mxu0 0.0
    %864 = vmatprep.subr.mxu0 0.0
    %865 = vmatpush1.msra.mxu0 0.0
    %866 = vmatprep.subr.mxu0 0.0
    %867 = vmatpush1.msra.mxu0 0.0
    %868 = vmatprep.subr.mxu0 0.0
    %869 = vmatpush1.msra.mxu0 0.0
    %870 = vmatprep.subr.mxu0 0.0
    %871 = vmatpush1.msra.mxu0 0.0
    %872 = vmatprep.subr.mxu0 0.0
    %873 = vmatpush1.msra.mxu0 0.0
    %874 = vmatprep.mubr.f32.mxu0 0.0
    %875 = vmatmul.mubr.f32.gmra.mrb[0].mxu0 %v808
    %v876 = vpop.f32.mrb[0].mxu0
    %v877 = vadd.f32 0.0, %v876
    %v878 = vpop.f32.mrb[0].mxu0
    %879 = vdwg.mxu0
    %v881 = vrot.slane %v877, 7
    %v884 = vadd.f32 %v662, %v881
    %v885 = vadd.f32 %v667, %v877
    %v886 = vxor.u32 %v884, 2147483648
    %v887 = vxor.u32 %v885, 2147483648
    %v888 = vmul.f32 %v886, 1.442695
    %v889 = vpow.pop %v888
    %v890 = vmul.f32 %v887, 1.442695
    %v891 = vpow.pop %v890
    %v892 = vadd.f32 %v889, 1.0
    %v893 = vadd.f32 %v891, 1.0
    %v894 = vrcp.pop %v892
    %v895 = vmul.f32 1.0, %v894
    %v896 = vrcp.pop %v893
    %v897 = vmul.f32 1.0, %v896
    %v898 = vtanh.pop %v884
    %v899 = vtanh.pop %v885
    %v902 = vrot.slane %v787, 7
    %v903 = vrot.slane %v788, 7
    %v906 = vmul.f32 %v895, %v902
    %v907 = vmul.f32 %v897, %v903
    %910 = vrot.lane.b32.xlu0 %v898, 64
    %v911 = vpop.permute.xlu0 %910
    %912 = vrot.lane.b32.xlu0 %v899, 64
    %v913 = vpop.permute.xlu0 %912
    %v916 = vmul.f32 %v895, %v911
    %v917 = vmul.f32 %v897, %v913
    %920 = vrot.lane.b32.xlu0 %v916, 32
    %v921 = vpop.permute.xlu0 %920
    %922 = vrot.lane.b32.xlu0 %v917, 32
    %v923 = vpop.permute.xlu0 %922
    %v926 = vadd.f32 %v906, %v921
    %v927 = vadd.f32 %v907, %v923
    %v928 = vtanh.pop %v926
    %v929 = vtanh.pop %v927
    %932 = vrot.lane.b32.xlu0 %v928, 64
    %v933 = vpop.permute.xlu0 %932
    %934 = vrot.lane.b32.xlu0 %v929, 64
    %v935 = vpop.permute.xlu0 %934
    %v938 = vmul.f32 %v895, %v933
    %v939 = vmul.f32 %v897, %v935
    %v942 = vrot.slane %v938, 1
    %v943 = vsel %vm804, %v939, %v942
    %944 = vrot.lane.b32.xlu0 %v943, 32
    %v945 = vpop.permute.xlu0 %944
    %v946 = vsel %vm74, %v945, 0
    %948 = vmatprep.subr.mxu0 0.0
    %949 = vmatpush1.msra.mxu0 %v670
    %950 = vmatprep.subr.mxu0 0.0
    %951 = vmatpush1.msra.mxu0 %v671
    %952 = vmatprep.subr.mxu0 0.0
    %953 = vmatpush1.msra.mxu0 %v672
    %954 = vmatprep.subr.mxu0 0.0
    %955 = vmatpush1.msra.mxu0 %v673
    %956 = vmatprep.subr.mxu0 0.0
    %957 = vmatpush1.msra.mxu0 0.0
    %958 = vmatprep.subr.mxu0 0.0
    %959 = vmatpush1.msra.mxu0 0.0
    %960 = vmatprep.subr.mxu0 0.0
    %961 = vmatpush1.msra.mxu0 0.0
    %962 = vmatprep.subr.mxu0 0.0
    %963 = vmatpush1.msra.mxu0 0.0
    %964 = vmatprep.subr.mxu0 0.0
    %965 = vmatpush1.msra.mxu0 0.0
    %966 = vmatprep.subr.mxu0 0.0
    %967 = vmatpush1.msra.mxu0 0.0
    %968 = vmatprep.subr.mxu0 0.0
    %969 = vmatpush1.msra.mxu0 0.0
    %970 = vmatprep.subr.mxu0 0.0
    %971 = vmatpush1.msra.mxu0 0.0
    %972 = vmatprep.subr.mxu0 0.0
    %973 = vmatpush1.msra.mxu0 0.0
    %974 = vmatprep.subr.mxu0 0.0
    %975 = vmatpush1.msra.mxu0 0.0
    %976 = vmatprep.subr.mxu0 0.0
    %977 = vmatpush1.msra.mxu0 0.0
    %978 = vmatprep.subr.mxu0 0.0
    %979 = vmatpush1.msra.mxu0 0.0
    %980 = vmatprep.subr.mxu0 0.0
    %981 = vmatpush1.msra.mxu0 0.0
    %982 = vmatprep.subr.mxu0 0.0
    %983 = vmatpush1.msra.mxu0 0.0
    %984 = vmatprep.subr.mxu0 0.0
    %985 = vmatpush1.msra.mxu0 0.0
    %986 = vmatprep.subr.mxu0 0.0
    %987 = vmatpush1.msra.mxu0 0.0
    %988 = vmatprep.subr.mxu0 0.0
    %989 = vmatpush1.msra.mxu0 0.0
    %990 = vmatprep.subr.mxu0 0.0
    %991 = vmatpush1.msra.mxu0 0.0
    %992 = vmatprep.subr.mxu0 0.0
    %993 = vmatpush1.msra.mxu0 0.0
    %994 = vmatprep.subr.mxu0 0.0
    %995 = vmatpush1.msra.mxu0 0.0
    %996 = vmatprep.subr.mxu0 0.0
    %997 = vmatpush1.msra.mxu0 0.0
    %998 = vmatprep.subr.mxu0 0.0
    %999 = vmatpush1.msra.mxu0 0.0
    %1000 = vmatprep.subr.mxu0 0.0
    %1001 = vmatpush1.msra.mxu0 0.0
    %1002 = vmatprep.subr.mxu0 0.0
    %1003 = vmatpush1.msra.mxu0 0.0
    %1004 = vmatprep.subr.mxu0 0.0
    %1005 = vmatpush1.msra.mxu0 0.0
    %1006 = vmatprep.subr.mxu0 0.0
    %1007 = vmatpush1.msra.mxu0 0.0
    %1008 = vmatprep.subr.mxu0 0.0
    %1009 = vmatpush1.msra.mxu0 0.0
    %1010 = vmatprep.subr.mxu0 0.0
    %1011 = vmatpush1.msra.mxu0 0.0
    %1012 = vmatprep.mubr.f32.mxu0 0.0
    %1013 = vmatmul.mubr.f32.gmra.mrb[0].mxu0 %v946
    %v1014 = vpop.f32.mrb[0].mxu0
    %v1015 = vadd.f32 0.0, %v1014
    %v1016 = vpop.f32.mrb[0].mxu0
    %1017 = vdwg.mxu0
    %v1019 = vrot.slane %v1015, 6
    %v1020 = vrot.slane %v1015, 7
    %v1023 = vadd.f32 %v662, %v1019
    %v1024 = vadd.f32 %v667, %v1020
    %v1025 = vxor.u32 %v1023, 2147483648
    %v1026 = vxor.u32 %v1024, 2147483648
    %v1027 = vmul.f32 %v1025, 1.442695
    %v1028 = vpow.pop %v1027
    %v1029 = vmul.f32 %v1026, 1.442695
    %v1030 = vpow.pop %v1029
    %v1031 = vadd.f32 %v1028, 1.0
    %v1032 = vadd.f32 %v1030, 1.0
    %v1033 = vrcp.pop %v1031
    %v1034 = vmul.f32 1.0, %v1033
    %v1035 = vrcp.pop %v1032
    %v1036 = vmul.f32 1.0, %v1035
    %v1037 = vtanh.pop %v1023
    %v1038 = vtanh.pop %v1024
    %v1041 = vrot.slane %v926, 7
    %v1042 = vrot.slane %v927, 7
    %v1045 = vmul.f32 %v1034, %v1041
    %v1046 = vmul.f32 %v1036, %v1042
    %1049 = vrot.lane.b32.xlu0 %v1037, 64
    %v1050 = vpop.permute.xlu0 %1049
    %1051 = vrot.lane.b32.xlu0 %v1038, 64
    %v1052 = vpop.permute.xlu0 %1051
    %v1055 = vmul.f32 %v1034, %v1050
    %v1056 = vmul.f32 %v1036, %v1052
    %1059 = vrot.lane.b32.xlu0 %v1055, 32
    %v1060 = vpop.permute.xlu0 %1059
    %1061 = vrot.lane.b32.xlu0 %v1056, 32
    %v1062 = vpop.permute.xlu0 %1061
    %v1065 = vadd.f32 %v1045, %v1060
    %v1066 = vadd.f32 %v1046, %v1062
    %v1067 = vtanh.pop %v1065
    %v1068 = vtanh.pop %v1066
    %1071 = vrot.lane.b32.xlu0 %v1067, 64
    %v1072 = vpop.permute.xlu0 %1071
    %1073 = vrot.lane.b32.xlu0 %v1068, 64
    %v1074 = vpop.permute.xlu0 %1073
    %v1077 = vmul.f32 %v1034, %v1072
    %v1078 = vmul.f32 %v1036, %v1074
    %v1081 = vrot.slane %v1077, 2
    %v1082 = vrot.slane %v1078, 1
    %v1083 = vsel %vm804, %v1082, %v1081
    %1084 = vrot.lane.b32.xlu0 %v1083, 32
    %v1085 = vpop.permute.xlu0 %1084
    %v1086 = vsel %vm74, %v1085, 0
    %1088 = vmatprep.subr.mxu0 0.0
    %1089 = vmatpush1.msra.mxu0 %v670
    %1090 = vmatprep.subr.mxu0 0.0
    %1091 = vmatpush1.msra.mxu0 %v671
    %1092 = vmatprep.subr.mxu0 0.0
    %1093 = vmatpush1.msra.mxu0 %v672
    %1094 = vmatprep.subr.mxu0 0.0
    %1095 = vmatpush1.msra.mxu0 %v673
    %1096 = vmatprep.subr.mxu0 0.0
    %1097 = vmatpush1.msra.mxu0 0.0
    %1098 = vmatprep.subr.mxu0 0.0
    %1099 = vmatpush1.msra.mxu0 0.0
    %1100 = vmatprep.subr.mxu0 0.0
    %1101 = vmatpush1.msra.mxu0 0.0
    %1102 = vmatprep.subr.mxu0 0.0
    %1103 = vmatpush1.msra.mxu0 0.0
    %1104 = vmatprep.subr.mxu0 0.0
    %1105 = vmatpush1.msra.mxu0 0.0
    %1106 = vmatprep.subr.mxu0 0.0
    %1107 = vmatpush1.msra.mxu0 0.0
    %1108 = vmatprep.subr.mxu0 0.0
    %1109 = vmatpush1.msra.mxu0 0.0
    %1110 = vmatprep.subr.mxu0 0.0
    %1111 = vmatpush1.msra.mxu0 0.0
    %1112 = vmatprep.subr.mxu0 0.0
    %1113 = vmatpush1.msra.mxu0 0.0
    %1114 = vmatprep.subr.mxu0 0.0
    %1115 = vmatpush1.msra.mxu0 0.0
    %1116 = vmatprep.subr.mxu0 0.0
    %1117 = vmatpush1.msra.mxu0 0.0
    %1118 = vmatprep.subr.mxu0 0.0
    %1119 = vmatpush1.msra.mxu0 0.0
    %1120 = vmatprep.subr.mxu0 0.0
    %1121 = vmatpush1.msra.mxu0 0.0
    %1122 = vmatprep.subr.mxu0 0.0
    %1123 = vmatpush1.msra.mxu0 0.0
    %1124 = vmatprep.subr.mxu0 0.0
    %1125 = vmatpush1.msra.mxu0 0.0
    %1126 = vmatprep.subr.mxu0 0.0
    %1127 = vmatpush1.msra.mxu0 0.0
    %1128 = vmatprep.subr.mxu0 0.0
    %1129 = vmatpush1.msra.mxu0 0.0
    %1130 = vmatprep.subr.mxu0 0.0
    %1131 = vmatpush1.msra.mxu0 0.0
    %1132 = vmatprep.subr.mxu0 0.0
    %1133 = vmatpush1.msra.mxu0 0.0
    %1134 = vmatprep.subr.mxu0 0.0
    %1135 = vmatpush1.msra.mxu0 0.0
    %1136 = vmatprep.subr.mxu0 0.0
    %1137 = vmatpush1.msra.mxu0 0.0
    %1138 = vmatprep.subr.mxu0 0.0
    %1139 = vmatpush1.msra.mxu0 0.0
    %1140 = vmatprep.subr.mxu0 0.0
    %1141 = vmatpush1.msra.mxu0 0.0
    %1142 = vmatprep.subr.mxu0 0.0
    %1143 = vmatpush1.msra.mxu0 0.0
    %1144 = vmatprep.subr.mxu0 0.0
    %1145 = vmatpush1.msra.mxu0 0.0
    %1146 = vmatprep.subr.mxu0 0.0
    %1147 = vmatpush1.msra.mxu0 0.0
    %1148 = vmatprep.subr.mxu0 0.0
    %1149 = vmatpush1.msra.mxu0 0.0
    %1150 = vmatprep.subr.mxu0 0.0
    %1151 = vmatpush1.msra.mxu0 0.0
    %1152 = vmatprep.mubr.f32.mxu0 0.0
    %1153 = vmatmul.mubr.f32.gmra.mrb[0].mxu0 %v1086
    %v1154 = vpop.f32.mrb[0].mxu0
    %v1155 = vadd.f32 0.0, %v1154
    %v1156 = vpop.f32.mrb[0].mxu0
    %1157 = vdwg.mxu0
    %v1159 = vrot.slane %v1155, 5
    %v1160 = vrot.slane %v1155, 6
    %v1163 = vadd.f32 %v662, %v1159
    %v1164 = vadd.f32 %v667, %v1160
    %v1165 = vxor.u32 %v1163, 2147483648
    %v1166 = vxor.u32 %v1164, 2147483648
    %v1167 = vmul.f32 %v1165, 1.442695
    %v1168 = vpow.pop %v1167
    %v1169 = vmul.f32 %v1166, 1.442695
    %v1170 = vpow.pop %v1169
    %v1171 = vadd.f32 %v1168, 1.0
    %v1172 = vadd.f32 %v1170, 1.0
    %v1173 = vrcp.pop %v1171
    %v1174 = vmul.f32 1.0, %v1173
    %v1175 = vrcp.pop %v1172
    %v1176 = vmul.f32 1.0, %v1175
    %v1177 = vtanh.pop %v1163
    %v1178 = vtanh.pop %v1164
    %v1181 = vrot.slane %v1065, 7
    %v1182 = vrot.slane %v1066, 7
    %v1185 = vmul.f32 %v1174, %v1181
    %v1186 = vmul.f32 %v1176, %v1182
    %1189 = vrot.lane.b32.xlu0 %v1177, 64
    %v1190 = vpop.permute.xlu0 %1189
    %1191 = vrot.lane.b32.xlu0 %v1178, 64
    %v1192 = vpop.permute.xlu0 %1191
    %v1195 = vmul.f32 %v1174, %v1190
    %v1196 = vmul.f32 %v1176, %v1192
    %1199 = vrot.lane.b32.xlu0 %v1195, 32
    %v1200 = vpop.permute.xlu0 %1199
    %1201 = vrot.lane.b32.xlu0 %v1196, 32
    %v1202 = vpop.permute.xlu0 %1201
    %v1205 = vadd.f32 %v1185, %v1200
    %v1206 = vadd.f32 %v1186, %v1202
    %v1207 = vtanh.pop %v1205
    %v1208 = vtanh.pop %v1206
    %1211 = vrot.lane.b32.xlu0 %v1207, 64
    %v1212 = vpop.permute.xlu0 %1211
    %1213 = vrot.lane.b32.xlu0 %v1208, 64
    %v1214 = vpop.permute.xlu0 %1213
    %v1217 = vmul.f32 %v1174, %v1212
    %v1218 = vmul.f32 %v1176, %v1214
    %v1221 = vrot.slane %v1217, 3
    %v1222 = vrot.slane %v1218, 2
    %v1223 = vsel %vm804, %v1222, %v1221
    %1224 = vrot.lane.b32.xlu0 %v1223, 32
    %v1225 = vpop.permute.xlu0 %1224
    %v1226 = vsel %vm74, %v1225, 0
    %1228 = vmatprep.subr.mxu0 0.0
    %1229 = vmatpush1.msra.mxu0 %v670
    %1230 = vmatprep.subr.mxu0 0.0
    %1231 = vmatpush1.msra.mxu0 %v671
    %1232 = vmatprep.subr.mxu0 0.0
    %1233 = vmatpush1.msra.mxu0 %v672
    %1234 = vmatprep.subr.mxu0 0.0
    %1235 = vmatpush1.msra.mxu0 %v673
    %1236 = vmatprep.subr.mxu0 0.0
    %1237 = vmatpush1.msra.mxu0 0.0
    %1238 = vmatprep.subr.mxu0 0.0
    %1239 = vmatpush1.msra.mxu0 0.0
    %1240 = vmatprep.subr.mxu0 0.0
    %1241 = vmatpush1.msra.mxu0 0.0
    %1242 = vmatprep.subr.mxu0 0.0
    %1243 = vmatpush1.msra.mxu0 0.0
    %1244 = vmatprep.subr.mxu0 0.0
    %1245 = vmatpush1.msra.mxu0 0.0
    %1246 = vmatprep.subr.mxu0 0.0
    %1247 = vmatpush1.msra.mxu0 0.0
    %1248 = vmatprep.subr.mxu0 0.0
    %1249 = vmatpush1.msra.mxu0 0.0
    %1250 = vmatprep.subr.mxu0 0.0
    %1251 = vmatpush1.msra.mxu0 0.0
    %1252 = vmatprep.subr.mxu0 0.0
    %1253 = vmatpush1.msra.mxu0 0.0
    %1254 = vmatprep.subr.mxu0 0.0
    %1255 = vmatpush1.msra.mxu0 0.0
    %1256 = vmatprep.subr.mxu0 0.0
    %1257 = vmatpush1.msra.mxu0 0.0
    %1258 = vmatprep.subr.mxu0 0.0
    %1259 = vmatpush1.msra.mxu0 0.0
    %1260 = vmatprep.subr.mxu0 0.0
    %1261 = vmatpush1.msra.mxu0 0.0
    %1262 = vmatprep.subr.mxu0 0.0
    %1263 = vmatpush1.msra.mxu0 0.0
    %1264 = vmatprep.subr.mxu0 0.0
    %1265 = vmatpush1.msra.mxu0 0.0
    %1266 = vmatprep.subr.mxu0 0.0
    %1267 = vmatpush1.msra.mxu0 0.0
    %1268 = vmatprep.subr.mxu0 0.0
    %1269 = vmatpush1.msra.mxu0 0.0
    %1270 = vmatprep.subr.mxu0 0.0
    %1271 = vmatpush1.msra.mxu0 0.0
    %1272 = vmatprep.subr.mxu0 0.0
    %1273 = vmatpush1.msra.mxu0 0.0
    %1274 = vmatprep.subr.mxu0 0.0
    %1275 = vmatpush1.msra.mxu0 0.0
    %1276 = vmatprep.subr.mxu0 0.0
    %1277 = vmatpush1.msra.mxu0 0.0
    %1278 = vmatprep.subr.mxu0 0.0
    %1279 = vmatpush1.msra.mxu0 0.0
    %1280 = vmatprep.subr.mxu0 0.0
    %1281 = vmatpush1.msra.mxu0 0.0
    %1282 = vmatprep.subr.mxu0 0.0
    %1283 = vmatpush1.msra.mxu0 0.0
    %1284 = vmatprep.subr.mxu0 0.0
    %1285 = vmatpush1.msra.mxu0 0.0
    %1286 = vmatprep.subr.mxu0 0.0
    %1287 = vmatpush1.msra.mxu0 0.0
    %1288 = vmatprep.subr.mxu0 0.0
    %1289 = vmatpush1.msra.mxu0 0.0
    %1290 = vmatprep.subr.mxu0 0.0
    %1291 = vmatpush1.msra.mxu0 0.0
    %1292 = vmatprep.mubr.f32.mxu0 0.0
    %1293 = vmatmul.mubr.f32.gmra.mrb[0].mxu0 %v1226
    %v1294 = vpop.f32.mrb[0].mxu0
    %v1295 = vadd.f32 0.0, %v1294
    %v1296 = vpop.f32.mrb[0].mxu0
    %1297 = vdwg.mxu0
    %v1299 = vrot.slane %v1295, 4
    %v1300 = vrot.slane %v1295, 5
    %v1303 = vadd.f32 %v662, %v1299
    %v1304 = vadd.f32 %v667, %v1300
    %v1305 = vxor.u32 %v1303, 2147483648
    %v1306 = vxor.u32 %v1304, 2147483648
    %v1307 = vmul.f32 %v1305, 1.442695
    %v1308 = vpow.pop %v1307
    %v1309 = vmul.f32 %v1306, 1.442695
    %v1310 = vpow.pop %v1309
    %v1311 = vadd.f32 %v1308, 1.0
    %v1312 = vadd.f32 %v1310, 1.0
    %v1313 = vrcp.pop %v1311
    %v1314 = vmul.f32 1.0, %v1313
    %v1315 = vrcp.pop %v1312
    %v1316 = vmul.f32 1.0, %v1315
    %v1317 = vtanh.pop %v1303
    %v1318 = vtanh.pop %v1304
    %v1321 = vrot.slane %v1205, 7
    %v1322 = vrot.slane %v1206, 7
    %v1325 = vmul.f32 %v1314, %v1321
    %v1326 = vmul.f32 %v1316, %v1322
    %1329 = vrot.lane.b32.xlu0 %v1317, 64
    %v1330 = vpop.permute.xlu0 %1329
    %1331 = vrot.lane.b32.xlu0 %v1318, 64
    %v1332 = vpop.permute.xlu0 %1331
    %v1335 = vmul.f32 %v1314, %v1330
    %v1336 = vmul.f32 %v1316, %v1332
    %1339 = vrot.lane.b32.xlu0 %v1335, 32
    %v1340 = vpop.permute.xlu0 %1339
    %1341 = vrot.lane.b32.xlu0 %v1336, 32
    %v1342 = vpop.permute.xlu0 %1341
    %v1345 = vadd.f32 %v1325, %v1340
    %v1346 = vadd.f32 %v1326, %v1342
    %v1347 = vtanh.pop %v1345
    %v1348 = vtanh.pop %v1346
    %1351 = vrot.lane.b32.xlu0 %v1347, 64
    %v1352 = vpop.permute.xlu0 %1351
    %1353 = vrot.lane.b32.xlu0 %v1348, 64
    %v1354 = vpop.permute.xlu0 %1353
    %v1357 = vmul.f32 %v1314, %v1352
    %v1358 = vmul.f32 %v1316, %v1354
    %v1361 = vrot.slane %v1357, 4
    %v1362 = vrot.slane %v1358, 3
    %v1363 = vsel %vm804, %v1362, %v1361
    %1364 = vrot.lane.b32.xlu0 %v1363, 32
    %v1365 = vpop.permute.xlu0 %1364
    %v1366 = vsel %vm74, %v1365, 0
    %1368 = vmatprep.subr.mxu0 0.0
    %1369 = vmatpush1.msra.mxu0 %v670
    %1370 = vmatprep.subr.mxu0 0.0
    %1371 = vmatpush1.msra.mxu0 %v671
    %1372 = vmatprep.subr.mxu0 0.0
    %1373 = vmatpush1.msra.mxu0 %v672
    %1374 = vmatprep.subr.mxu0 0.0
    %1375 = vmatpush1.msra.mxu0 %v673
    %1376 = vmatprep.subr.mxu0 0.0
    %1377 = vmatpush1.msra.mxu0 0.0
    %1378 = vmatprep.subr.mxu0 0.0
    %1379 = vmatpush1.msra.mxu0 0.0
    %1380 = vmatprep.subr.mxu0 0.0
    %1381 = vmatpush1.msra.mxu0 0.0
    %1382 = vmatprep.subr.mxu0 0.0
    %1383 = vmatpush1.msra.mxu0 0.0
    %1384 = vmatprep.subr.mxu0 0.0
    %1385 = vmatpush1.msra.mxu0 0.0
    %1386 = vmatprep.subr.mxu0 0.0
    %1387 = vmatpush1.msra.mxu0 0.0
    %1388 = vmatprep.subr.mxu0 0.0
    %1389 = vmatpush1.msra.mxu0 0.0
    %1390 = vmatprep.subr.mxu0 0.0
    %1391 = vmatpush1.msra.mxu0 0.0
    %1392 = vmatprep.subr.mxu0 0.0
    %1393 = vmatpush1.msra.mxu0 0.0
    %1394 = vmatprep.subr.mxu0 0.0
    %1395 = vmatpush1.msra.mxu0 0.0
    %1396 = vmatprep.subr.mxu0 0.0
    %1397 = vmatpush1.msra.mxu0 0.0
    %1398 = vmatprep.subr.mxu0 0.0
    %1399 = vmatpush1.msra.mxu0 0.0
    %1400 = vmatprep.subr.mxu0 0.0
    %1401 = vmatpush1.msra.mxu0 0.0
    %1402 = vmatprep.subr.mxu0 0.0
    %1403 = vmatpush1.msra.mxu0 0.0
    %1404 = vmatprep.subr.mxu0 0.0
    %1405 = vmatpush1.msra.mxu0 0.0
    %1406 = vmatprep.subr.mxu0 0.0
    %1407 = vmatpush1.msra.mxu0 0.0
    %1408 = vmatprep.subr.mxu0 0.0
    %1409 = vmatpush1.msra.mxu0 0.0
    %1410 = vmatprep.subr.mxu0 0.0
    %1411 = vmatpush1.msra.mxu0 0.0
    %1412 = vmatprep.subr.mxu0 0.0
    %1413 = vmatpush1.msra.mxu0 0.0
    %1414 = vmatprep.subr.mxu0 0.0
    %1415 = vmatpush1.msra.mxu0 0.0
    %1416 = vmatprep.subr.mxu0 0.0
    %1417 = vmatpush1.msra.mxu0 0.0
    %1418 = vmatprep.subr.mxu0 0.0
    %1419 = vmatpush1.msra.mxu0 0.0
    %1420 = vmatprep.subr.mxu0 0.0
    %1421 = vmatpush1.msra.mxu0 0.0
    %1422 = vmatprep.subr.mxu0 0.0
    %1423 = vmatpush1.msra.mxu0 0.0
    %1424 = vmatprep.subr.mxu0 0.0
    %1425 = vmatpush1.msra.mxu0 0.0
    %1426 = vmatprep.subr.mxu0 0.0
    %1427 = vmatpush1.msra.mxu0 0.0
    %1428 = vmatprep.subr.mxu0 0.0
    %1429 = vmatpush1.msra.mxu0 0.0
    %1430 = vmatprep.subr.mxu0 0.0
    %1431 = vmatpush1.msra.mxu0 0.0
    %1432 = vmatprep.mubr.f32.mxu0 0.0
    %1433 = vmatmul.mubr.f32.gmra.mrb[0].mxu0 %v1366
    %v1434 = vpop.f32.mrb[0].mxu0
    %v1435 = vadd.f32 0.0, %v1434
    %v1436 = vpop.f32.mrb[0].mxu0
    %1437 = vdwg.mxu0
    %v1439 = vrot.slane %v1435, 3
    %v1440 = vrot.slane %v1435, 4
    %v1443 = vadd.f32 %v662, %v1439
    %v1444 = vadd.f32 %v667, %v1440
    %v1445 = vxor.u32 %v1443, 2147483648
    %v1446 = vxor.u32 %v1444, 2147483648
    %v1447 = vmul.f32 %v1445, 1.442695
    %v1448 = vpow.pop %v1447
    %v1449 = vmul.f32 %v1446, 1.442695
    %v1450 = vpow.pop %v1449
    %v1451 = vadd.f32 %v1448, 1.0
    %v1452 = vadd.f32 %v1450, 1.0
    %v1453 = vrcp.pop %v1451
    %v1454 = vmul.f32 1.0, %v1453
    %v1455 = vrcp.pop %v1452
    %v1456 = vmul.f32 1.0, %v1455
    %v1457 = vtanh.pop %v1443
    %v1458 = vtanh.pop %v1444
    %v1461 = vrot.slane %v1345, 7
    %v1462 = vrot.slane %v1346, 7
    %v1465 = vmul.f32 %v1454, %v1461
    %v1466 = vmul.f32 %v1456, %v1462
    %1469 = vrot.lane.b32.xlu0 %v1457, 64
    %v1470 = vpop.permute.xlu0 %1469
    %1471 = vrot.lane.b32.xlu0 %v1458, 64
    %v1472 = vpop.permute.xlu0 %1471
    %v1475 = vmul.f32 %v1454, %v1470
    %v1476 = vmul.f32 %v1456, %v1472
    %1479 = vrot.lane.b32.xlu0 %v1475, 32
    %v1480 = vpop.permute.xlu0 %1479
    %1481 = vrot.lane.b32.xlu0 %v1476, 32
    %v1482 = vpop.permute.xlu0 %1481
    %v1485 = vadd.f32 %v1465, %v1480
    %v1486 = vadd.f32 %v1466, %v1482
    %v1487 = vtanh.pop %v1485
    %v1488 = vtanh.pop %v1486
    %1491 = vrot.lane.b32.xlu0 %v1487, 64
    %v1492 = vpop.permute.xlu0 %1491
    %1493 = vrot.lane.b32.xlu0 %v1488, 64
    %v1494 = vpop.permute.xlu0 %1493
    %v1497 = vmul.f32 %v1454, %v1492
    %v1498 = vmul.f32 %v1456, %v1494
    %v1501 = vrot.slane %v1497, 5
    %v1502 = vrot.slane %v1498, 4
    %v1503 = vsel %vm804, %v1502, %v1501
    %1504 = vrot.lane.b32.xlu0 %v1503, 32
    %v1505 = vpop.permute.xlu0 %1504
    %v1506 = vsel %vm74, %v1505, 0
    %1508 = vmatprep.subr.mxu0 0.0
    %1509 = vmatpush1.msra.mxu0 %v670
    %1510 = vmatprep.subr.mxu0 0.0
    %1511 = vmatpush1.msra.mxu0 %v671
    %1512 = vmatprep.subr.mxu0 0.0
    %1513 = vmatpush1.msra.mxu0 %v672
    %1514 = vmatprep.subr.mxu0 0.0
    %1515 = vmatpush1.msra.mxu0 %v673
    %1516 = vmatprep.subr.mxu0 0.0
    %1517 = vmatpush1.msra.mxu0 0.0
    %1518 = vmatprep.subr.mxu0 0.0
    %1519 = vmatpush1.msra.mxu0 0.0
    %1520 = vmatprep.subr.mxu0 0.0
    %1521 = vmatpush1.msra.mxu0 0.0
    %1522 = vmatprep.subr.mxu0 0.0
    %1523 = vmatpush1.msra.mxu0 0.0
    %1524 = vmatprep.subr.mxu0 0.0
    %1525 = vmatpush1.msra.mxu0 0.0
    %1526 = vmatprep.subr.mxu0 0.0
    %1527 = vmatpush1.msra.mxu0 0.0
    %1528 = vmatprep.subr.mxu0 0.0
    %1529 = vmatpush1.msra.mxu0 0.0
    %1530 = vmatprep.subr.mxu0 0.0
    %1531 = vmatpush1.msra.mxu0 0.0
    %1532 = vmatprep.subr.mxu0 0.0
    %1533 = vmatpush1.msra.mxu0 0.0
    %1534 = vmatprep.subr.mxu0 0.0
    %1535 = vmatpush1.msra.mxu0 0.0
    %1536 = vmatprep.subr.mxu0 0.0
    %1537 = vmatpush1.msra.mxu0 0.0
    %1538 = vmatprep.subr.mxu0 0.0
    %1539 = vmatpush1.msra.mxu0 0.0
    %1540 = vmatprep.subr.mxu0 0.0
    %1541 = vmatpush1.msra.mxu0 0.0
    %1542 = vmatprep.subr.mxu0 0.0
    %1543 = vmatpush1.msra.mxu0 0.0
    %1544 = vmatprep.subr.mxu0 0.0
    %1545 = vmatpush1.msra.mxu0 0.0
    %1546 = vmatprep.subr.mxu0 0.0
    %1547 = vmatpush1.msra.mxu0 0.0
    %1548 = vmatprep.subr.mxu0 0.0
    %1549 = vmatpush1.msra.mxu0 0.0
    %1550 = vmatprep.subr.mxu0 0.0
    %1551 = vmatpush1.msra.mxu0 0.0
    %1552 = vmatprep.subr.mxu0 0.0
    %1553 = vmatpush1.msra.mxu0 0.0
    %1554 = vmatprep.subr.mxu0 0.0
    %1555 = vmatpush1.msra.mxu0 0.0
    %1556 = vmatprep.subr.mxu0 0.0
    %1557 = vmatpush1.msra.mxu0 0.0
    %1558 = vmatprep.subr.mxu0 0.0
    %1559 = vmatpush1.msra.mxu0 0.0
    %1560 = vmatprep.subr.mxu0 0.0
    %1561 = vmatpush1.msra.mxu0 0.0
    %1562 = vmatprep.subr.mxu0 0.0
    %1563 = vmatpush1.msra.mxu0 0.0
    %1564 = vmatprep.subr.mxu0 0.0
    %1565 = vmatpush1.msra.mxu0 0.0
    %1566 = vmatprep.subr.mxu0 0.0
    %1567 = vmatpush1.msra.mxu0 0.0
    %1568 = vmatprep.subr.mxu0 0.0
    %1569 = vmatpush1.msra.mxu0 0.0
    %1570 = vmatprep.subr.mxu0 0.0
    %1571 = vmatpush1.msra.mxu0 0.0
    %1572 = vmatprep.mubr.f32.mxu0 0.0
    %1573 = vmatmul.mubr.f32.gmra.mrb[0].mxu0 %v1506
    %v1574 = vpop.f32.mrb[0].mxu0
    %v1575 = vadd.f32 0.0, %v1574
    %v1576 = vpop.f32.mrb[0].mxu0
    %1577 = vdwg.mxu0
    %v1579 = vrot.slane %v1575, 2
    %v1580 = vrot.slane %v1575, 3
    %v1583 = vadd.f32 %v662, %v1579
    %v1584 = vadd.f32 %v667, %v1580
    %v1585 = vxor.u32 %v1583, 2147483648
    %v1586 = vxor.u32 %v1584, 2147483648
    %v1587 = vmul.f32 %v1585, 1.442695
    %v1588 = vpow.pop %v1587
    %v1589 = vmul.f32 %v1586, 1.442695
    %v1590 = vpow.pop %v1589
    %v1591 = vadd.f32 %v1588, 1.0
    %v1592 = vadd.f32 %v1590, 1.0
    %v1593 = vrcp.pop %v1591
    %v1594 = vmul.f32 1.0, %v1593
    %v1595 = vrcp.pop %v1592
    %v1596 = vmul.f32 1.0, %v1595
    %v1597 = vtanh.pop %v1583
    %v1598 = vtanh.pop %v1584
    %v1601 = vrot.slane %v1485, 7
    %v1602 = vrot.slane %v1486, 7
    %v1605 = vmul.f32 %v1594, %v1601
    %v1606 = vmul.f32 %v1596, %v1602
    %1609 = vrot.lane.b32.xlu0 %v1597, 64
    %v1610 = vpop.permute.xlu0 %1609
    %1611 = vrot.lane.b32.xlu0 %v1598, 64
    %v1612 = vpop.permute.xlu0 %1611
    %v1615 = vmul.f32 %v1594, %v1610
    %v1616 = vmul.f32 %v1596, %v1612
    %1619 = vrot.lane.b32.xlu0 %v1615, 32
    %v1620 = vpop.permute.xlu0 %1619
    %1621 = vrot.lane.b32.xlu0 %v1616, 32
    %v1622 = vpop.permute.xlu0 %1621
    %v1625 = vadd.f32 %v1605, %v1620
    %v1626 = vadd.f32 %v1606, %v1622
    %v1627 = vtanh.pop %v1625
    %v1628 = vtanh.pop %v1626
    %1631 = vrot.lane.b32.xlu0 %v1627, 64
    %v1632 = vpop.permute.xlu0 %1631
    %1633 = vrot.lane.b32.xlu0 %v1628, 64
    %v1634 = vpop.permute.xlu0 %1633
    %v1637 = vmul.f32 %v1594, %v1632
    %v1638 = vmul.f32 %v1596, %v1634
    %v1641 = vrot.slane %v1637, 6
    %v1642 = vrot.slane %v1638, 5
    %v1643 = vsel %vm804, %v1642, %v1641
    %1644 = vrot.lane.b32.xlu0 %v1643, 32
    %v1645 = vpop.permute.xlu0 %1644
    %v1646 = vsel %vm74, %v1645, 0
    %1648 = vmatprep.subr.mxu0 0.0
    %1649 = vmatpush1.msra.mxu0 %v670
    %1650 = vmatprep.subr.mxu0 0.0
    %1651 = vmatpush1.msra.mxu0 %v671
    %1652 = vmatprep.subr.mxu0 0.0
    %1653 = vmatpush1.msra.mxu0 %v672
    %1654 = vmatprep.subr.mxu0 0.0
    %1655 = vmatpush1.msra.mxu0 %v673
    %1656 = vmatprep.subr.mxu0 0.0
    %1657 = vmatpush1.msra.mxu0 0.0
    %1658 = vmatprep.subr.mxu0 0.0
    %1659 = vmatpush1.msra.mxu0 0.0
    %1660 = vmatprep.subr.mxu0 0.0
    %1661 = vmatpush1.msra.mxu0 0.0
    %1662 = vmatprep.subr.mxu0 0.0
    %1663 = vmatpush1.msra.mxu0 0.0
    %1664 = vmatprep.subr.mxu0 0.0
    %1665 = vmatpush1.msra.mxu0 0.0
    %1666 = vmatprep.subr.mxu0 0.0
    %1667 = vmatpush1.msra.mxu0 0.0
    %1668 = vmatprep.subr.mxu0 0.0
    %1669 = vmatpush1.msra.mxu0 0.0
    %1670 = vmatprep.subr.mxu0 0.0
    %1671 = vmatpush1.msra.mxu0 0.0
    %1672 = vmatprep.subr.mxu0 0.0
    %1673 = vmatpush1.msra.mxu0 0.0
    %1674 = vmatprep.subr.mxu0 0.0
    %1675 = vmatpush1.msra.mxu0 0.0
    %1676 = vmatprep.subr.mxu0 0.0
    %1677 = vmatpush1.msra.mxu0 0.0
    %1678 = vmatprep.subr.mxu0 0.0
    %1679 = vmatpush1.msra.mxu0 0.0
    %1680 = vmatprep.subr.mxu0 0.0
    %1681 = vmatpush1.msra.mxu0 0.0
    %1682 = vmatprep.subr.mxu0 0.0
    %1683 = vmatpush1.msra.mxu0 0.0
    %1684 = vmatprep.subr.mxu0 0.0
    %1685 = vmatpush1.msra.mxu0 0.0
    %1686 = vmatprep.subr.mxu0 0.0
    %1687 = vmatpush1.msra.mxu0 0.0
    %1688 = vmatprep.subr.mxu0 0.0
    %1689 = vmatpush1.msra.mxu0 0.0
    %1690 = vmatprep.subr.mxu0 0.0
    %1691 = vmatpush1.msra.mxu0 0.0
    %1692 = vmatprep.subr.mxu0 0.0
    %1693 = vmatpush1.msra.mxu0 0.0
    %1694 = vmatprep.subr.mxu0 0.0
    %1695 = vmatpush1.msra.mxu0 0.0
    %1696 = vmatprep.subr.mxu0 0.0
    %1697 = vmatpush1.msra.mxu0 0.0
    %1698 = vmatprep.subr.mxu0 0.0
    %1699 = vmatpush1.msra.mxu0 0.0
    %1700 = vmatprep.subr.mxu0 0.0
    %1701 = vmatpush1.msra.mxu0 0.0
    %1702 = vmatprep.subr.mxu0 0.0
    %1703 = vmatpush1.msra.mxu0 0.0
    %1704 = vmatprep.subr.mxu0 0.0
    %1705 = vmatpush1.msra.mxu0 0.0
    %1706 = vmatprep.subr.mxu0 0.0
    %1707 = vmatpush1.msra.mxu0 0.0
    %1708 = vmatprep.subr.mxu0 0.0
    %1709 = vmatpush1.msra.mxu0 0.0
    %1710 = vmatprep.subr.mxu0 0.0
    %1711 = vmatpush1.msra.mxu0 0.0
    %1712 = vmatprep.mubr.f32.mxu0 0.0
    %1713 = vmatmul.mubr.f32.gmra.mrb[0].mxu0 %v1646
    %v1714 = vpop.f32.mrb[0].mxu0
    %v1715 = vadd.f32 0.0, %v1714
    %v1716 = vpop.f32.mrb[0].mxu0
    %1717 = vdwg.mxu0
    %v1719 = vrot.slane %v1715, 1
    %v1720 = vrot.slane %v1715, 2
    %v1723 = vadd.f32 %v662, %v1719
    %v1724 = vadd.f32 %v667, %v1720
    %v1725 = vxor.u32 %v1723, 2147483648
    %v1726 = vxor.u32 %v1724, 2147483648
    %v1727 = vmul.f32 %v1725, 1.442695
    %v1728 = vpow.pop %v1727
    %v1729 = vmul.f32 %v1726, 1.442695
    %v1730 = vpow.pop %v1729
    %v1731 = vadd.f32 %v1728, 1.0
    %v1732 = vadd.f32 %v1730, 1.0
    %v1733 = vrcp.pop %v1731
    %v1734 = vmul.f32 1.0, %v1733
    %v1735 = vrcp.pop %v1732
    %v1736 = vmul.f32 1.0, %v1735
    %v1737 = vtanh.pop %v1723
    %v1738 = vtanh.pop %v1724
    %v1741 = vrot.slane %v1625, 7
    %v1742 = vrot.slane %v1626, 7
    %v1745 = vmul.f32 %v1734, %v1741
    %v1746 = vmul.f32 %v1736, %v1742
    %1749 = vrot.lane.b32.xlu0 %v1737, 64
    %v1750 = vpop.permute.xlu0 %1749
    %1751 = vrot.lane.b32.xlu0 %v1738, 64
    %v1752 = vpop.permute.xlu0 %1751
    %v1755 = vmul.f32 %v1734, %v1750
    %v1756 = vmul.f32 %v1736, %v1752
    %1759 = vrot.lane.b32.xlu0 %v1755, 32
    %v1760 = vpop.permute.xlu0 %1759
    %1761 = vrot.lane.b32.xlu0 %v1756, 32
    %v1762 = vpop.permute.xlu0 %1761
    %v1765 = vadd.f32 %v1745, %v1760
    %v1766 = vadd.f32 %v1746, %v1762
    %v1767 = vtanh.pop %v1765
    %v1768 = vtanh.pop %v1766
    %1771 = vrot.lane.b32.xlu0 %v1767, 64
    %v1772 = vpop.permute.xlu0 %1771
    %1773 = vrot.lane.b32.xlu0 %v1768, 64
    %v1774 = vpop.permute.xlu0 %1773
    %v1777 = vmul.f32 %v1734, %v1772
    %v1778 = vmul.f32 %v1736, %v1774
    %v1779 = vld [vmem:[%s11] sm:$0xff]
    %v1780 = vld [vmem:[%s11 + $0x8] sm:$0xff]
    %v1781 = vld [vmem:[%s11 + $0x10] sm:$0xff]
    %v1782 = vld [vmem:[%s11 + $0x18] sm:$0xff]
    %v1783 = vld [vmem:[%s12] sm:$0x1]
    %v1785 = vlaneseq
    %v1786 = vshrl.u32 %v1785, 7
    %v1787 = vsub.s32 0, %v1786
    %v1788 = vrot.slane %v1783, %v1787
    %v1792 = vrot.slane %v1777, 7
    %v1793 = vrot.slane %v1778, 6
    %v1794 = vsel %vm804, %v1793, %v1792
    %1795 = vrot.lane.b32.xlu0 %v1794, 32
    %v1796 = vpop.permute.xlu0 %1795
    %v1797 = vsel %vm74, %v1796, 0
    %1799 = vmatprep.subr.mxu0 0.0
    %1800 = vmatpush1.msra.mxu0 %v1779
    %1801 = vmatprep.subr.mxu0 0.0
    %1802 = vmatpush1.msra.mxu0 %v1780
    %1803 = vmatprep.subr.mxu0 0.0
    %1804 = vmatpush1.msra.mxu0 %v1781
    %1805 = vmatprep.subr.mxu0 0.0
    %1806 = vmatpush1.msra.mxu0 %v1782
    %1807 = vmatprep.subr.mxu0 0.0
    %1808 = vmatpush1.msra.mxu0 0.0
    %1809 = vmatprep.subr.mxu0 0.0
    %1810 = vmatpush1.msra.mxu0 0.0
    %1811 = vmatprep.subr.mxu0 0.0
    %1812 = vmatpush1.msra.mxu0 0.0
    %1813 = vmatprep.subr.mxu0 0.0
    %1814 = vmatpush1.msra.mxu0 0.0
    %1815 = vmatprep.subr.mxu0 0.0
    %1816 = vmatpush1.msra.mxu0 0.0
    %1817 = vmatprep.subr.mxu0 0.0
    %1818 = vmatpush1.msra.mxu0 0.0
    %1819 = vmatprep.subr.mxu0 0.0
    %1820 = vmatpush1.msra.mxu0 0.0
    %1821 = vmatprep.subr.mxu0 0.0
    %1822 = vmatpush1.msra.mxu0 0.0
    %1823 = vmatprep.subr.mxu0 0.0
    %1824 = vmatpush1.msra.mxu0 0.0
    %1825 = vmatprep.subr.mxu0 0.0
    %1826 = vmatpush1.msra.mxu0 0.0
    %1827 = vmatprep.subr.mxu0 0.0
    %1828 = vmatpush1.msra.mxu0 0.0
    %1829 = vmatprep.subr.mxu0 0.0
    %1830 = vmatpush1.msra.mxu0 0.0
    %1831 = vmatprep.subr.mxu0 0.0
    %1832 = vmatpush1.msra.mxu0 0.0
    %1833 = vmatprep.subr.mxu0 0.0
    %1834 = vmatpush1.msra.mxu0 0.0
    %1835 = vmatprep.subr.mxu0 0.0
    %1836 = vmatpush1.msra.mxu0 0.0
    %1837 = vmatprep.subr.mxu0 0.0
    %1838 = vmatpush1.msra.mxu0 0.0
    %1839 = vmatprep.subr.mxu0 0.0
    %1840 = vmatpush1.msra.mxu0 0.0
    %1841 = vmatprep.subr.mxu0 0.0
    %1842 = vmatpush1.msra.mxu0 0.0
    %1843 = vmatprep.subr.mxu0 0.0
    %1844 = vmatpush1.msra.mxu0 0.0
    %1845 = vmatprep.subr.mxu0 0.0
    %1846 = vmatpush1.msra.mxu0 0.0
    %1847 = vmatprep.subr.mxu0 0.0
    %1848 = vmatpush1.msra.mxu0 0.0
    %1849 = vmatprep.subr.mxu0 0.0
    %1850 = vmatpush1.msra.mxu0 0.0
    %1851 = vmatprep.subr.mxu0 0.0
    %1852 = vmatpush1.msra.mxu0 0.0
    %1853 = vmatprep.subr.mxu0 0.0
    %1854 = vmatpush1.msra.mxu0 0.0
    %1855 = vmatprep.subr.mxu0 0.0
    %1856 = vmatpush1.msra.mxu0 0.0
    %1857 = vmatprep.subr.mxu0 0.0
    %1858 = vmatpush1.msra.mxu0 0.0
    %1859 = vmatprep.subr.mxu0 0.0
    %1860 = vmatpush1.msra.mxu0 0.0
    %1861 = vmatprep.subr.mxu0 0.0
    %1862 = vmatpush1.msra.mxu0 0.0
    %1863 = vmatprep.mubr.f32.mxu0 0.0
    %1864 = vmatmul.mubr.f32.gmra.mrb[0].mxu0 %v1797
    %v1865 = vpop.f32.mrb[0].mxu0
    %v1866 = vadd.f32 %v1788, %v1865
    %v1867 = vpop.f32.mrb[0].mxu0
    %1868 = vdwg.mxu0
    %vm1869 = vcmask 9216
    %1870 = vst.msk [vmem:[#allocation6] sm:$0x3] %vm1869, %v1866
    // Predicated region
    $region58: #{tpu_custom_call.1} parent=1 // pred_check
      _
    $region59: #{tpu_custom_call.1} parent=1 // pred_check_branch
      %1872 = sbr.rel (0) target = $region61
    $region60: #{tpu_custom_call.1} parent=1 // pred_region
      %s1874 = ssub.s32 32, 32
      %1875 = vsyncadd [#allocation5], %s1874
      %s1877 = sshll.u32 [#allocation6], 4
      %s1878 = int_to_ptr.vmem [resolvable:$true] %s1877
      %1880 = dma.vmem_to_hbm [thread:$0]  %s1878, 32, %s13, [#allocation5]
    $region61: #{tpu_custom_call.1} parent=1 // pred_fallthru
      _
    // Predicated region
    $region62: #{tpu_custom_call.1} parent=1 // pred_check
      _
    $region63: #{tpu_custom_call.1} parent=1 // pred_check_branch
      %1882 = sbr.rel (0) target = $region65
    $region64: #{tpu_custom_call.1} parent=1 // pred_region
      %1883 = dma.done [#allocation5], 32
    $region65: #{tpu_custom_call.1} parent=1 // pred_fallthru
      _
    %1884 = vsyncpa [#allocation4], 1
    %1885 = vsyncpa [#allocation5], 1

</llo_original>
